<compile_context>
chip_gen: v7x
topology: tpu7x:2x2x1
jax: 0.10.0
libtpu: 0.0.40
codegen_flags: <defaults>
</compile_context>

<pallas_src>
import math

import jax
import jax.numpy as jnp
from jax.experimental import pallas as pl
from jax.experimental.pallas import tpu as pltpu


def _round_up(v, m):
    return (v + m - 1) // m * m


def _vmem_capacity_bytes():
    try:
        cap = getattr(pltpu.get_tpu_info(), "vmem_capacity_bytes", None)
        if cap:
            return int(cap)
    except Exception:
        pass
    return 64 << 20          # conservative default (v7x per-TensorCore VMEM)


def _axis_weights(P, n_feat, G, start, bin_sz, grid_f, inv_grid, lim):
    """(N, P, n_feat) separable 1-D RoIAlign weight factors, torchvision semantics
    (sampling_ratio=0, aligned=True), vectorized over all boxes (runs in XLA, not in
    the kernel)."""
    N = start.shape[0]
    p_idx = jnp.arange(P, dtype=jnp.float32)[None, :, None]
    a_idx = jnp.arange(n_feat, dtype=jnp.float32)[None, None, :]
    start = start[:, None, None]
    bin_sz = bin_sz[:, None, None]
    grid_f = grid_f[:, None, None]
    inv_grid = inv_grid[:, None, None]
    lim = lim[:, None, None]
    acc = jnp.zeros((N, P, n_feat), jnp.float32)
    for s in range(G):   # static bound; per-box samples beyond gh/gw are masked off
        coord = start + p_idx * bin_sz + (jnp.float32(s) + 0.5) * bin_sz * inv_grid
        in_range = jnp.logical_and(coord >= -1.0, coord <= lim)
        cc = jnp.maximum(coord, 0.0)
        low = jnp.floor(cc)
        snap = low >= lim - 1.0
        low = jnp.where(snap, lim - 1.0, low)
        frac = jnp.where(snap, 0.0, cc - low)
        high = jnp.where(snap, low, low + 1.0)
        contrib = (1.0 - frac) * (a_idx == low).astype(jnp.float32) \
                  + frac * (a_idx == high).astype(jnp.float32)
        ok = jnp.logical_and(in_range, jnp.float32(s) < grid_f)
        acc = acc + jnp.where(ok, contrib, 0.0)
    return acc


def _roi_align_kernel(bm_ref, lo_ref, hi_ref, ky_ref, kxt_ref, feat_ref,
                      out_ref, acc_ref):
    del bm_ref                           # used only by the feature index_map
    i = pl.program_id(0)                 # box (sorted by (level, batch, window))
    hk = pl.program_id(1)                # H-chunk offset inside the box's window
    n_hk = pl.num_programs(1)
    C, Hc, W = feat_ref.shape[1], feat_ref.shape[2], feat_ref.shape[3]
    P = ky_ref.shape[1]

    @pl.when(hk == 0)
    def _():
        acc_ref[...] = jnp.zeros_like(acc_ref)

    # Chunks past this box's window are clamped to a repeated block index in the
    # index_maps (=> no DMA) and skipped here (=> no MXU/VALU work).
    @pl.when(lo_ref[i] + hk <= hi_ref[i])
    def _():
        feat = feat_ref[0]                                      # (C, Hc, W), native dtype
        ky = ky_ref[0].astype(feat.dtype)                       # (P, Hc) precomputed row factor
        ky_b = jnp.broadcast_to(ky[None], (C, P, Hc))
        acc_ref[...] += jax.lax.dot_general(                    # contract H on the MXU
            ky_b, feat, (((2,), (1,)), ((0,), (0,))),
            preferred_element_type=jnp.float32)                 # (C, P, W), f32 accumulate

    @pl.when(hk == n_hk - 1)
    def _():
        kxt = kxt_ref[0]                                        # (W, P) f32, 1/count folded in
        kxt_b = jnp.broadcast_to(kxt[None], (C, W, P))
        pooled = jax.lax.dot_general(                           # contract W, natural orientation
            acc_ref[...], kxt_b, (((2,), (1,)), ((0,), (0,))),
            preferred_element_type=jnp.float32)                 # (C, P, P)
        out_ref[0] = pooled.astype(out_ref.dtype)


class ROIPoolerPallas:
    """Pallas re-implementation of detection ROIPooler.forward."""

    def __init__(self, output_size, scales, canonical_box_size=224, canonical_level=4):
        if isinstance(output_size, int):
            output_size = (output_size, output_size)
        assert output_size[0] == output_size[1], "square output only"
        self.output_size = output_size
        self.scales = tuple(float(s) for s in scales)
        self.min_level = int(-math.log2(scales[0]))
        self.max_level = int(-math.log2(scales[-1]))
        self.canonical_level = canonical_level
        self.canonical_box_size = canonical_box_size
        self.level_assignments = None

    # ---- glue: narrow + attach_batch_idx + assign_boxes_to_levels + RoIAlign scalars ----
    def _box_params(self, x, box_lists):
        L = len(self.scales)
        P = self.output_size[0]
        B = x[0].shape[0]
        batch_idx = jnp.concatenate(
            [jnp.full((b.shape[0],), bi, jnp.int32) for bi, b in enumerate(box_lists)])
        boxes = jnp.concatenate([b[:, :4].astype(jnp.float32) for b in box_lists], axis=0)
        N = boxes.shape[0]
        x1, y1, x2, y2 = boxes[:, 0], boxes[:, 1], boxes[:, 2], boxes[:, 3]

        if L == 1:
            lvl = jnp.zeros((N,), jnp.int32)
        else:
            sizes = jnp.sqrt((x2 - x1) * (y2 - y1))
            lvl = jnp.floor(self.canonical_level
                            + jnp.log2(sizes / self.canonical_box_size + 1e-8))
            lvl = jnp.clip(lvl, self.min_level, self.max_level).astype(jnp.int32) - self.min_level

        scales_arr = jnp.asarray(self.scales, jnp.float32)
        h_arr = jnp.asarray([f.shape[2] for f in x], jnp.float32)
        w_arr = jnp.asarray([f.shape[3] for f in x], jnp.float32)
        scale = scales_arr[lvl]
        h_lim = h_arr[lvl]
        w_lim = w_arr[lvl]

        # aligned=True -> -0.5 offset, no size clamp.
        rs_h = y1 * scale - 0.5
        rs_w = x1 * scale - 0.5
        roi_h = (y2 - y1) * scale
        roi_w = (x2 - x1) * scale
        bin_h = roi_h / P
        bin_w = roi_w / P
        gh = jnp.ceil(roi_h / P)
        gw = jnp.ceil(roi_w / P)
        inv_gh = 1.0 / jnp.maximum(gh, 1.0)
        inv_gw = 1.0 / jnp.maximum(gw, 1.0)
        inv_count = 1.0 / jnp.maximum(gh * gw, 1.0)
        box_map = (lvl * B + batch_idx).astype(jnp.int32)   # (level, batch) slab id
        return dict(rs_h=rs_h, rs_w=rs_w, bin_h=bin_h, bin_w=bin_w, gh=gh, gw=gw,
                    inv_gh=inv_gh, inv_gw=inv_gw, inv_count=inv_count,
                    h_lim=h_lim, w_lim=w_lim, box_map=box_map, lvl=lvl,
                    batch_idx=batch_idx)

    def __call__(self, x, box_lists, _max_block_rows=None):
        L = len(self.scales)
        B, C = x[0].shape[0], x[0].shape[1]
        P = self.output_size[0]
        dtype = x[0].dtype
        itemsize = jnp.dtype(dtype).itemsize
        N = sum(int(b.shape[0]) for b in box_lists)
        if N == 0:
            self.level_assignments = jnp.zeros((0,), jnp.int32)
            return jnp.zeros((0, C, P, P), dtype)

        Hmax = max(f.shape[2] for f in x)
        Wmax = max(f.shape[3] for f in x)
        Wr = _round_up(Wmax, 8)
        # TODO(synk): static sample-grid bounds assume proposals are clipped to the image;
        # unclipped boxes with ceil(roi/P) > Gh/Gw silently drop the excess samples.
        Gh = -(-Hmax // P)
        Gw = -(-Wmax // P)

        pr = self._box_params(x, box_lists)
        self.level_assignments = pr["lvl"]

        # ---- VMEM-budgeted H block size (whole level on 128 MiB parts, 128-row
        #      multiples on 64 MiB parts) -------------------------------------------
        vmem_cap = _vmem_capacity_bytes()
        Hmax_r = _round_up(Hmax, 8)
        acc_bytes = C * P * Wr * 4
        out_blk = C * P * P * itemsize
        kxt_blk = Wr * P * 4
        per_row = 2 * (C * Wr * itemsize + P * 4)           # double-buffered feat + Ky rows
        budget = int(vmem_cap * 0.75) - acc_bytes - 2 * out_blk - 2 * kxt_blk - (2 << 20)
        max_rows = max(budget // max(per_row, 1), 8)
        if _max_block_rows is not None:
            max_rows = min(max_rows, int(_max_block_rows))
        if max_rows >= Hmax_r:
            Hc = Hmax_r                                      # whole level resident
        else:
            Hc = max(128, (max_rows // 128) * 128)           # chunked; 128-multiple keeps the
                                                             # Ky block lane-aligned / MXU-friendly
        Hp = _round_up(Hmax, Hc)
        n_hc = Hp // Hc

        # ---- per-box separable weights, built once in the wrapper (off the VALU path) ----
        Ky = _axis_weights(P, Hp, Gh, pr["rs_h"], pr["bin_h"], pr["gh"],
                           pr["inv_gh"], pr["h_lim"])                       # (N, P, Hp)
        Kx = _axis_weights(P, Wr, Gw, pr["rs_w"], pr["bin_w"], pr["gw"],
                           pr["inv_gw"], pr["w_lim"])                       # (N, P, Wr)
        KxT = jnp.swapaxes(Kx * pr["inv_count"][:, None, None], 1, 2)       # (N, Wr, P)

        # ---- per-box H-chunk window: only stream the rows the RoI actually touches ----
        chunk_used = (Ky != 0.0).any(axis=1).reshape(N, n_hc, Hc).any(axis=-1)
        lo = jnp.argmax(chunk_used, axis=1).astype(jnp.int32)
        hi = (n_hc - 1 - jnp.argmax(chunk_used[:, ::-1], axis=1)).astype(jnp.int32)
        hi = jnp.where(chunk_used.any(axis=1), hi, lo)

        # ---- sort boxes by (level, batch, first chunk) so consecutive grid steps reuse
        #      the resident feature block (Pallas only re-DMAs when the index changes) ----
        key = pr["box_map"] * jnp.int32(n_hc) + lo
        order = jnp.argsort(key)
        inv_order = jnp.argsort(order)
        bm_s = pr["box_map"][order]
        lo_s = lo[order]
        hi_s = hi[order]
        Ky_s = Ky[order]
        KxT_s = KxT[order]

        # Grid extent over H chunks = worst-case per-box window (concrete when possible).
        if n_hc == 1:
            n_hk = 1
        else:
            try:
                n_hk = max(int(jax.device_get(jnp.max(hi - lo))) + 1, 1)
            except Exception:        # traced shapes (e.g. under jit): fall back to all chunks
                n_hk = n_hc

        # ---- feature pyramid: NCHW, zero-padded to a common (Hp, Wr) slab grid ----------
        # TODO(synk): one pallas_call per level would avoid streaming the cross-level
        # W padding for the low-resolution levels.
        feats = [jnp.pad(f, ((0, 0), (0, 0), (0, Hp - f.shape[2]), (0, Wr - f.shape[3])))
                 for f in x]
        feats = jnp.stack(feats, axis=0).reshape(L * B, C, Hp, Wr).astype(dtype)

        feat_blk = C * Hc * Wr * itemsize
        ky_blk = P * Hc * 4
        vmem_bytes = 2 * feat_blk + 2 * ky_blk + 2 * kxt_blk + 2 * out_blk + acc_bytes + (2 << 20)
        vmem_bytes = int(min(max(vmem_bytes, 16 << 20), int(vmem_cap * 0.96)))

        out = pl.pallas_call(
            _roi_align_kernel,
            out_shape=jax.ShapeDtypeStruct((N, C, P, P), dtype),
            grid_spec=pltpu.PrefetchScalarGridSpec(
                num_scalar_prefetch=3,           # slab id + per-box chunk window, in SMEM
                grid=(N, n_hk),
                in_specs=[
                    # Ky: same (clamped) chunk index as the feature block.
                    pl.BlockSpec((1, P, Hc),
                                 lambda i, hk, bm, lo, hi:
                                 (i, 0, jnp.minimum(lo[i] + hk, hi[i]))),
                    # KxT: resident per box.
                    pl.BlockSpec((1, Wr, P),
                                 lambda i, hk, bm, lo, hi: (i, 0, 0)),
                    # Feature: per-box windowed H chunk of the (level, batch) slab.
                    pl.BlockSpec((1, C, Hc, Wr),
                                 lambda i, hk, bm, lo, hi:
                                 (bm[i], 0, jnp.minimum(lo[i] + hk, hi[i]), 0)),
                ],
                out_specs=pl.BlockSpec((1, C, P, P),
                                       lambda i, hk, bm, lo, hi: (i, 0, 0, 0)),
                scratch_shapes=[pltpu.VMEM((C, P, Wr), jnp.float32)],
            ),
            compiler_params=pltpu.CompilerParams(
                dimension_semantics=("parallel", "arbitrary"),   # boxes shard across TCs (v7x)
                vmem_limit_bytes=vmem_bytes,
            ),
        )(bm_s, lo_s, hi_s, Ky_s, KxT_s, feats)

        return out[inv_order]    # back to original box order; already (num_boxes, C, P, P)


# ------------------------- pure-JAX reference (validation) -------------------------

def _roi_pool_reference(pooler, x, box_lists):
    """Plain-JAX RoIAlign with the same math (no Pallas, unpadded features)."""
    P = pooler.output_size[0]
    pr = pooler._box_params(x, box_lists)
    N = int(pr["box_map"].shape[0])
    outs = []
    for n in range(N):
        l = int(pr["lvl"][n])
        b = int(pr["batch_idx"][n])
        feat = x[l][b].astype(jnp.float32)               # (C, H, W)
        H, W = feat.shape[1], feat.shape[2]
        sl = slice(n, n + 1)
        ky = _axis_weights(P, H, -(-H // P), pr["rs_h"][sl], pr["bin_h"][sl],
                           pr["gh"][sl], pr["inv_gh"][sl], pr["h_lim"][sl])[0]
        kx = _axis_weights(P, W, -(-W // P), pr["rs_w"][sl], pr["bin_w"][sl],
                           pr["gw"][sl], pr["inv_gw"][sl], pr["w_lim"][sl])[0]
        outs.append(jnp.einsum('ph,chw,qw->cpq', ky, feat, kx) * pr["inv_count"][n])
    return jnp.stack(outs, axis=0)


if __name__ == "__main__":
    key = jax.random.PRNGKey(0)

    # ---------- test 1: two-level FPN, whole-level-resident path ----------
    B, C, img = 2, 8, 64
    scales = (0.25, 0.125)           # feature maps 16x16 and 8x8
    P = 4

    x = []
    for s in scales:
        H = W = int(img * s)
        key, k = jax.random.split(key)
        x.append(jax.random.normal(k, (B, C, H, W), jnp.float32))

    box_lists = []
    for _ in range(B):
        key, k1, k2 = jax.random.split(key, 3)
        ctr = jax.random.uniform(k1, (3, 2), minval=26.0, maxval=38.0)
        half = jax.random.uniform(k2, (3, 2), minval=6.0, maxval=26.0)
        box_lists.append(jnp.concatenate([jnp.clip(ctr - half, 0.0, float(img)),
                                          jnp.clip(ctr + half, 0.0, float(img))], axis=1))

    pooler = ROIPoolerPallas(P, scales, canonical_box_size=32, canonical_level=3)
    out = jax.block_until_ready(pooler(x, box_lists))
    nb = sum(b.shape[0] for b in box_lists)
    assert out.shape == (nb, C, P, P), out.shape
    assert bool(jnp.all(jnp.isfinite(out)))
    ref = _roi_pool_reference(pooler, x, box_lists)
    err1 = float(jnp.max(jnp.abs(out.astype(jnp.float32) - ref)))
    assert err1 < 2e-2, f"test1 max|kernel - reference| = {err1}"

    # ---------- test 2: single level, forced multi-chunk windowed path ----------
    key, k = jax.random.split(key)
    x2 = [jax.random.normal(k, (1, 8, 160, 128), jnp.float32)]
    boxes2 = jnp.asarray([[4.0,   2.0,  60.0,  30.0],    # H-chunk 0 only
                          [10.0, 100.0,  90.0, 150.0],   # spans the 128-row chunk boundary
                          [20.0, 130.0, 120.0, 158.0],   # H-chunk 1 only
                          [40.0,  40.0,  80.0,  90.0]],  # H-chunk 0 only
                         jnp.float32)
    pooler2 = ROIPoolerPallas(P, (1.0,))
    out2 = jax.block_until_ready(pooler2(x2, [boxes2], _max_block_rows=128))
    assert out2.shape == (4, 8, P, P), out2.shape
    ref2 = _roi_pool_reference(pooler2, x2, [boxes2])
    err2 = float(jnp.max(jnp.abs(out2.astype(jnp.float32) - ref2)))
    assert err2 < 2e-2, f"test2 max|kernel - reference| = {err2}"

    print("KERNEL_OK")
</pallas_src>

<mosaic_0001>
module attributes {stable_mosaic.version = 11 : i64} {
  func.func @_roi_align_kernel(%arg0: i32, %arg1: i32, %arg2: memref<6xi32, #tpu.memory_space<smem>>, %arg3: memref<6xi32, #tpu.memory_space<smem>>, %arg4: memref<6xi32, #tpu.memory_space<smem>>, %arg5: memref<1x4x16xf32, #tpu.memory_space<vmem>>, %arg6: memref<1x16x4xf32, #tpu.memory_space<vmem>>, %arg7: memref<1x8x16x16xf32, #tpu.memory_space<vmem>>, %arg8: memref<1x8x4x4xf32, #tpu.memory_space<vmem>>, %arg9: memref<8x4x16xf32, #tpu.memory_space<vmem>>) attributes {dimension_semantics = [#tpu.dimension_semantics<parallel>, #tpu.dimension_semantics<arbitrary>], iteration_bounds = array<i64: 6, 1>, scalar_prefetch = 3 : i64, scratch_operands = 1 : i64, tpu.core_type = #tpu.core_type<tc>, window_params = [{transform_indices = @transform_0, window_bounds = array<i64: 1, 4, 16>}, {transform_indices = @transform_1, window_bounds = array<i64: 1, 16, 4>}, {transform_indices = @transform_2, window_bounds = array<i64: 1, 8, 16, 16>}, {transform_indices = @transform_3, window_bounds = array<i64: 1, 8, 4, 4>}]} {
    %c0_i32 = arith.constant 0 : i32
    %0 = arith.cmpi eq, %arg1, %c0_i32 : i32
    %1 = arith.extui %0 : i1 to i32
    %c0_i32_0 = arith.constant 0 : i32
    %2 = arith.cmpi ne, %1, %c0_i32_0 : i32
    scf.if %2 {
      %cst = arith.constant 0.000000e+00 : f32
      %14 = vector.broadcast %cst : f32 to vector<8x4x16xf32>
      %c0 = arith.constant 0 : index
      %c0_4 = arith.constant 0 : index
      %c0_5 = arith.constant 0 : index
      %15 = vector.load %arg9[%c0, %c0_4, %c0_5] : memref<8x4x16xf32, #tpu.memory_space<vmem>>, vector<8x4x16xf32>
      tpu.vector_store %arg9[%c0, %c0_4, %c0_5], %14 {strides = array<i32>} : memref<8x4x16xf32, #tpu.memory_space<vmem>>, vector<8x4x16xf32>,
    } else {
    }
    %3 = arith.index_cast %arg0 : i32 to index
    %4 = memref.load %arg3[%3] : memref<6xi32, #tpu.memory_space<smem>>
    %5 = arith.addi %4, %arg1 : i32
    %6 = arith.index_cast %arg0 : i32 to index
    %7 = memref.load %arg4[%6] : memref<6xi32, #tpu.memory_space<smem>>
    %8 = arith.cmpi sle, %5, %7 : i32
    %9 = arith.extui %8 : i1 to i32
    %c0_i32_1 = arith.constant 0 : i32
    %10 = arith.cmpi ne, %9, %c0_i32_1 : i32
    scf.if %10 {
      %c0 = arith.constant 0 : index
      %c0_4 = arith.constant 0 : index
      %c0_5 = arith.constant 0 : index
      %c0_6 = arith.constant 0 : index
      %14 = vector.load %arg7[%c0, %c0_4, %c0_5, %c0_6] : memref<1x8x16x16xf32, #tpu.memory_space<vmem>>, vector<1x8x16x16xf32>
      %15 = vector.shape_cast %14 : vector<1x8x16x16xf32> to vector<8x16x16xf32>
      %c0_7 = arith.constant 0 : index
      %c0_8 = arith.constant 0 : index
      %c0_9 = arith.constant 0 : index
      %16 = vector.load %arg5[%c0_7, %c0_8, %c0_9] : memref<1x4x16xf32, #tpu.memory_space<vmem>>, vector<1x4x16xf32>
      %17 = vector.shape_cast %16 : vector<1x4x16xf32> to vector<4x16xf32>
      %18 = vector.shape_cast %17 : vector<4x16xf32> to vector<1x4x16xf32>
      %19 = vector.shape_cast %18 : vector<1x4x16xf32> to vector<1x4x16xf32>
      %20 = vector.broadcast %19 : vector<1x4x16xf32> to vector<8x4x16xf32>
      %c0_10 = arith.constant 0 : index
      %c0_11 = arith.constant 0 : index
      %c0_12 = arith.constant 0 : index
      %21 = vector.load %arg9[%c0_10, %c0_11, %c0_12] : memref<8x4x16xf32, #tpu.memory_space<vmem>>, vector<8x4x16xf32>
      %cst = arith.constant dense<0.000000e+00> : vector<8x4x16xf32>
      %22 = tpu.matmul %20, %15, %cst {dimension_numbers = #tpu.dot_dimension_numbers<[2], [1], [1], [2], [0, 0, 0, 1, 1, 2], [0], [0]>} : vector<8x4x16xf32>, vector<8x16x16xf32>, vector<8x4x16xf32> -> vector<8x4x16xf32>
      %23 = arith.addf %21, %22 : vector<8x4x16xf32>
      %c0_13 = arith.constant 0 : index
      %c0_14 = arith.constant 0 : index
      %c0_15 = arith.constant 0 : index
      %24 = vector.load %arg9[%c0_13, %c0_14, %c0_15] : memref<8x4x16xf32, #tpu.memory_space<vmem>>, vector<8x4x16xf32>
      tpu.vector_store %arg9[%c0_13, %c0_14, %c0_15], %23 {strides = array<i32>} : memref<8x4x16xf32, #tpu.memory_space<vmem>>, vector<8x4x16xf32>,
    } else {
    }
    %c0_i32_2 = arith.constant 0 : i32
    %11 = arith.cmpi eq, %arg1, %c0_i32_2 : i32
    %12 = arith.extui %11 : i1 to i32
    %c0_i32_3 = arith.constant 0 : i32
    %13 = arith.cmpi ne, %12, %c0_i32_3 : i32
    scf.if %13 {
      %c0 = arith.constant 0 : index
      %c0_4 = arith.constant 0 : index
      %c0_5 = arith.constant 0 : index
      %14 = vector.load %arg6[%c0, %c0_4, %c0_5] : memref<1x16x4xf32, #tpu.memory_space<vmem>>, vector<1x16x4xf32>
      %15 = vector.shape_cast %14 : vector<1x16x4xf32> to vector<16x4xf32>
      %16 = vector.shape_cast %15 : vector<16x4xf32> to vector<1x16x4xf32>
      %17 = vector.shape_cast %16 : vector<1x16x4xf32> to vector<1x16x4xf32>
      %18 = vector.broadcast %17 : vector<1x16x4xf32> to vector<8x16x4xf32>
      %c0_6 = arith.constant 0 : index
      %c0_7 = arith.constant 0 : index
      %c0_8 = arith.constant 0 : index
      %19 = vector.load %arg9[%c0_6, %c0_7, %c0_8] : memref<8x4x16xf32, #tpu.memory_space<vmem>>, vector<8x4x16xf32>
      %cst = arith.constant dense<0.000000e+00> : vector<8x4x4xf32>
      %20 = tpu.matmul %19, %18, %cst {dimension_numbers = #tpu.dot_dimension_numbers<[2], [1], [1], [2], [0, 0, 0, 1, 1, 2], [0], [0]>} : vector<8x4x16xf32>, vector<8x16x4xf32>, vector<8x4x4xf32> -> vector<8x4x4xf32>
      %c0_9 = arith.constant 0 : index
      %c0_10 = arith.constant 0 : index
      %c0_11 = arith.constant 0 : index
      %c0_12 = arith.constant 0 : index
      %21 = vector.load %arg8[%c0_9, %c0_10, %c0_11, %c0_12] : memref<1x8x4x4xf32, #tpu.memory_space<vmem>>, vector<1x8x4x4xf32>
      %22 = vector.shape_cast %21 : vector<1x8x4x4xf32> to vector<8x4x4xf32>
      %23 = vector.shape_cast %20 : vector<8x4x4xf32> to vector<1x8x4x4xf32>
      tpu.vector_store %arg8[%c0_9, %c0_10, %c0_11, %c0_12], %23 {strides = array<i32>} : memref<1x8x4x4xf32, #tpu.memory_space<vmem>>, vector<1x8x4x4xf32>,
    } else {
    }
    return
  }
  func.func @transform_0(%arg0: i32, %arg1: i32, %arg2: memref<6xi32, #tpu.memory_space<smem>>, %arg3: memref<6xi32, #tpu.memory_space<smem>>, %arg4: memref<6xi32, #tpu.memory_space<smem>>) -> (i32, i32, i32) {
    %0 = arith.index_cast %arg0 : i32 to index
    %1 = memref.load %arg3[%0] : memref<6xi32, #tpu.memory_space<smem>>
    %2 = arith.addi %1, %arg1 : i32
    %3 = arith.index_cast %arg0 : i32 to index
    %4 = memref.load %arg4[%3] : memref<6xi32, #tpu.memory_space<smem>>
    %5 = arith.minsi %2, %4 : i32
    %c0_i32 = arith.constant 0 : i32
    %c0_i32_0 = arith.constant 0 : i32
    return %arg0, %c0_i32, %5 : i32, i32, i32
  }
  func.func @transform_1(%arg0: i32, %arg1: i32, %arg2: memref<6xi32, #tpu.memory_space<smem>>, %arg3: memref<6xi32, #tpu.memory_space<smem>>, %arg4: memref<6xi32, #tpu.memory_space<smem>>) -> (i32, i32, i32) {
    %c0_i32 = arith.constant 0 : i32
    %c0_i32_0 = arith.constant 0 : i32
    %c0_i32_1 = arith.constant 0 : i32
    return %arg0, %c0_i32, %c0_i32_0 : i32, i32, i32
  }
  func.func @transform_2(%arg0: i32, %arg1: i32, %arg2: memref<6xi32, #tpu.memory_space<smem>>, %arg3: memref<6xi32, #tpu.memory_space<smem>>, %arg4: memref<6xi32, #tpu.memory_space<smem>>) -> (i32, i32, i32, i32) {
    %0 = arith.index_cast %arg0 : i32 to index
    %1 = memref.load %arg2[%0] : memref<6xi32, #tpu.memory_space<smem>>
    %2 = arith.index_cast %arg0 : i32 to index
    %3 = memref.load %arg3[%2] : memref<6xi32, #tpu.memory_space<smem>>
    %4 = arith.addi %3, %arg1 : i32
    %5 = arith.index_cast %arg0 : i32 to index
    %6 = memref.load %arg4[%5] : memref<6xi32, #tpu.memory_space<smem>>
    %7 = arith.minsi %4, %6 : i32
    %c0_i32 = arith.constant 0 : i32
    %c0_i32_0 = arith.constant 0 : i32
    %c0_i32_1 = arith.constant 0 : i32
    return %1, %c0_i32, %7, %c0_i32_0 : i32, i32, i32, i32
  }
  func.func @transform_3(%arg0: i32, %arg1: i32, %arg2: memref<6xi32, #tpu.memory_space<smem>>, %arg3: memref<6xi32, #tpu.memory_space<smem>>, %arg4: memref<6xi32, #tpu.memory_space<smem>>) -> (i32, i32, i32, i32) {
    %c0_i32 = arith.constant 0 : i32
    %c0_i32_0 = arith.constant 0 : i32
    %c0_i32_1 = arith.constant 0 : i32
    %c0_i32_2 = arith.constant 0 : i32
    return %arg0, %c0_i32, %c0_i32_0, %c0_i32_1 : i32, i32, i32, i32
  }
}

</mosaic_0001>

<llo_original>
// kernel: tpu_custom_call.1
$region0: #{tpu_custom_call.1}
  #allocation0 [shape = 'u32[]', space=smem, size = 0x4, offset = 0x4, fixed_abs, tag = 'smem constant byte address 0x4 - core index']
  #allocation1 [shape = 'u32[144,128]{1,0:T(1,128)}', space=vmem, size = 0x12000, scoped, tag = 'internal scratch']
  #allocation2 [shape = 'f32[8,4,16]{2,1,0:T(4,128)}', space=vmem, size = 0x4000, scoped, tag = 'scratch operand']
  #allocation3 [shape = 's32[1]{0}', space=sflag, size = 0x4, scoped, tag = 'scoped memory for tpu_custom_call.1']
  #allocation4 [shape = 'u8[512]{0}', space=smem, size = 0x200, scoped, tag = 'prefetched SMEM operand 0']
  #allocation5 [shape = 'u8[512]{0}', space=smem, size = 0x200, scoped, tag = 'prefetched SMEM operand 1']
  #allocation6 [shape = 'u8[512]{0}', space=smem, size = 0x200, scoped, tag = 'prefetched SMEM operand 2']
  %s0 = inlined_call_operand.vmem [shape: s32[6], index: 0, kind: input, shape index: {}]
  %s1 = inlined_call_operand.vmem [shape: s32[6], index: 1, kind: input, shape index: {}]
  %s2 = inlined_call_operand.vmem [shape: s32[6], index: 2, kind: input, shape index: {}]
  %s3 = inlined_call_operand.vmem [shape: f32[6,4,16], index: 3, kind: input, shape index: {}]
  %s4 = inlined_call_operand.vmem [shape: f32[6,16,4], index: 4, kind: input, shape index: {}]
  %s5 = inlined_call_operand.hbm [shape: f32[4,8,16,16], index: 5, kind: input, shape index: {}]
  %s6 = inlined_call_operand.vmem [shape: f32[6,8,4,4], index: 6, kind: output, shape index: {}]
  %s7 = sld [smem:[#allocation0]]
  $region61: #{tpu_custom_call.1} parent=0
    _
  %s9 = ssub.s32 1, %s7
  %s10 = scalar_select 0, %s9, %s7
  %s11 = sshll.u32 %s0, 4
  %s12 = int_to_ptr.vmem [resolvable:$true] %s11
  %14 = dma.vmem_to_smem %s12, 16, [#allocation4], [#allocation3]
  %s15 = sshll.u32 %s1, 4
  %s16 = int_to_ptr.vmem [resolvable:$true] %s15
  %18 = dma.vmem_to_smem %s16, 16, [#allocation5], [#allocation3]
  %s19 = sshll.u32 %s2, 4
  %s20 = int_to_ptr.vmem [resolvable:$true] %s19
  %22 = dma.vmem_to_smem %s20, 16, [#allocation6], [#allocation3]
  %23 = dma.done [#allocation3], 48
  %24 = sfence
  $region1: #{tpu_custom_call.1} parent=0
    #allocation7 [shape = 'u8[131072]{0}', space=vmem, size = 0x20000, scoped, tag = 'input window, operand 5']
    #allocation8 [shape = 's32[2]{0}', space=sflag, size = 0x8, scoped, tag = 'scoped memory for tpu_custom_call.1']
    %25 = vsyncpa [#allocation8], 0
    %s26 = scalar_lea.sflag [#allocation8], 1
    %27 = vsyncpa %s26, 0
    loop: start=0, step=1, limit=8
    $region2: #{tpu_custom_call.1} parent=1 // loop_pre_header
      _
    $region3: #{tpu_custom_call.1} parent=1 // loop_header
      %s29 = sphi 0, %s33
      %p30 = scmp.ge.s32.totalorder %s29, 8
      %s36 = sphi 0, %s48
      %s37 = sphi 0, %s44
      %s38 = sphi 0, %s36
      %s39 = sphi 0, %s37
      %s40 = sphi 0, %s38
      %s41 = sphi 0, %s39
      %s63 = sphi 0, %s65
      %s66 = sphi 0, %s63
      %s67 = sphi 0, %s66
      %s83 = sphi 0, %s67
      %s89 = sphi 0, %s91
      %s92 = sphi 0, %s89
      %s93 = sphi 0, %s92
      %s109 = sphi 0, %s93
      %s129 = sphi 0, %s131
      %s132 = sphi 0, %s129
      %s133 = sphi 0, %s132
      %s149 = sphi 0, %s133
      %s155 = sphi 0, %s157
      %s158 = sphi 0, %s155
      %s159 = sphi 0, %s158
      %s175 = sphi 0, %s159
    $region4: #{tpu_custom_call.1} parent=1 // loop_header_branch
      %32 = sbr.rel (%p30) target = $region8
    $region5: #{tpu_custom_call.1} parent=1 // loop_body
      %s34 = ssub.s32 %s29, 1
      %s35 = ssub.s32 %s29, 2
      %s42 = sadd.s32 1, %s37
      %p43 = scmp.ge.s32.totalorder %s42, 1
      %s44 = scalar_select %p43, 0, %s42
      %s45 = sadd.s32 1, %s36
      %s46 = scalar_select %p43, %s45, %s36
      %p47 = scmp.ge.s32.totalorder %s46, 6
      %s48 = scalar_select %p47, 0, %s46
      %s49 = sld [smem:[#allocation5 + %s36]]
      %s50 = sadd.s32 %s49, %s37
      %s51 = sld [smem:[#allocation6 + %s36]]
      %p52 = scmp.lt.s32.totalorder %s50, %s51
      %s53 = scalar_select %p52, %s50, %s51
      %s54 = sld [smem:[#allocation5 + %s48]]
      %s55 = sadd.s32 %s54, %s44
      %s56 = sld [smem:[#allocation6 + %s48]]
      %p57 = scmp.lt.s32.totalorder %s55, %s56
      %s58 = scalar_select %p57, %s55, %s56
      %s59 = ssub.s32 %s36, %s48
      %s60 = ssub.s32 %s53, %s58
      %s61 = sor.u32 %s59, %s60
      %p62 = scmp.eq.s32.totalorder %s61, 0
      %s64 = sadd.s32 %s63, 1
      %s65 = scalar_select %p62, %s63, %s64
      %p68 = pneg %p62
      %p69 = scmp.eq.s32.totalorder %s29, 5
      %p70 = por %p68, %p69
      %p71 = scmp.ne.s32.totalorder %s63, %s66
      %p72 = scmp.eq.s32.totalorder %s29, 0
      %p73 = por %p71, %p72
      %p74 = scmp.ne.s32.totalorder %s63, %s66
      %p75 = scmp.eq.s32.totalorder %s34, 5
      %p76 = por %p74, %p75
      %p77 = scmp.ne.s32.totalorder %s66, %s67
      %p78 = scmp.eq.s32.totalorder %s34, 0
      %p79 = por %p77, %p78
      %p80 = scmp.ne.s32.totalorder %s66, %s67
      %p81 = scmp.eq.s32.totalorder %s35, 5
      %p82 = por %p80, %p81
      %p84 = scmp.ne.s32.totalorder %s67, %s83
      %p85 = scmp.eq.s32.totalorder %s35, 0
      %p86 = por %p84, %p85
      %s87 = ssub.s32 %s36, %s48
      %p88 = scmp.eq.s32.totalorder %s87, 0
      %s90 = sadd.s32 %s89, 1
      %s91 = scalar_select %p88, %s89, %s90
      %p94 = pneg %p88
      %p95 = scmp.eq.s32.totalorder %s29, 5
      %p96 = por %p94, %p95
      %p97 = scmp.ne.s32.totalorder %s89, %s92
      %p98 = scmp.eq.s32.totalorder %s29, 0
      %p99 = por %p97, %p98
      %p100 = scmp.ne.s32.totalorder %s89, %s92
      %p101 = scmp.eq.s32.totalorder %s34, 5
      %p102 = por %p100, %p101
      %p103 = scmp.ne.s32.totalorder %s92, %s93
      %p104 = scmp.eq.s32.totalorder %s34, 0
      %p105 = por %p103, %p104
      %p106 = scmp.ne.s32.totalorder %s92, %s93
      %p107 = scmp.eq.s32.totalorder %s35, 5
      %p108 = por %p106, %p107
      %p110 = scmp.ne.s32.totalorder %s93, %s109
      %p111 = scmp.eq.s32.totalorder %s35, 0
      %p112 = por %p110, %p111
      %s113 = sld [smem:[#allocation4 + %s36]]
      %s114 = sld [smem:[#allocation5 + %s36]]
      %s115 = sadd.s32 %s114, %s37
      %s116 = sld [smem:[#allocation6 + %s36]]
      %p117 = scmp.lt.s32.totalorder %s115, %s116
      %s118 = scalar_select %p117, %s115, %s116
      %s119 = sld [smem:[#allocation4 + %s48]]
      %s120 = sld [smem:[#allocation5 + %s48]]
      %s121 = sadd.s32 %s120, %s44
      %s122 = sld [smem:[#allocation6 + %s48]]
      %p123 = scmp.lt.s32.totalorder %s121, %s122
      %s124 = scalar_select %p123, %s121, %s122
      %s125 = ssub.s32 %s113, %s119
      %s126 = ssub.s32 %s118, %s124
      %s127 = sor.u32 %s125, %s126
      %p128 = scmp.eq.s32.totalorder %s127, 0
      %s130 = sadd.s32 %s129, 1
      %s131 = scalar_select %p128, %s129, %s130
      %p134 = pneg %p128
      %p135 = scmp.eq.s32.totalorder %s29, 5
      %p136 = por %p134, %p135
      %p137 = scmp.ne.s32.totalorder %s129, %s132
      %p138 = scmp.eq.s32.totalorder %s29, 0
      %p139 = por %p137, %p138
      %p140 = scmp.ne.s32.totalorder %s129, %s132
      %p141 = scmp.eq.s32.totalorder %s34, 5
      %p142 = por %p140, %p141
      %p143 = scmp.ne.s32.totalorder %s132, %s133
      %p144 = scmp.eq.s32.totalorder %s34, 0
      %p145 = por %p143, %p144
      %p146 = scmp.ne.s32.totalorder %s132, %s133
      %p147 = scmp.eq.s32.totalorder %s35, 5
      %p148 = por %p146, %p147
      %p150 = scmp.ne.s32.totalorder %s133, %s149
      %p151 = scmp.eq.s32.totalorder %s35, 0
      %p152 = por %p150, %p151
      %s153 = ssub.s32 %s36, %s48
      %p154 = scmp.eq.s32.totalorder %s153, 0
      %s156 = sadd.s32 %s155, 1
      %s157 = scalar_select %p154, %s155, %s156
      %p160 = pneg %p154
      %p161 = scmp.eq.s32.totalorder %s29, 5
      %p162 = por %p160, %p161
      %p163 = scmp.ne.s32.totalorder %s155, %s158
      %p164 = scmp.eq.s32.totalorder %s29, 0
      %p165 = por %p163, %p164
      %p166 = scmp.ne.s32.totalorder %s155, %s158
      %p167 = scmp.eq.s32.totalorder %s34, 5
      %p168 = por %p166, %p167
      %p169 = scmp.ne.s32.totalorder %s158, %s159
      %p170 = scmp.eq.s32.totalorder %s34, 0
      %p171 = por %p169, %p170
      %p172 = scmp.ne.s32.totalorder %s158, %s159
      %p173 = scmp.eq.s32.totalorder %s35, 5
      %p174 = por %p172, %p173
      %p176 = scmp.ne.s32.totalorder %s159, %s175
      %p177 = scmp.eq.s32.totalorder %s35, 0
      %p178 = por %p176, %p177
      %p179 = scmp.le.s32.totalorder 1, %s29
      %p180 = scmp.lt.s32.totalorder %s29, 7
      %p181 = pnand %p179, %p180
      %p182 = pneg %p181
      // Predicated region
      $region9: #{tpu_custom_call.1} parent=5 // pred_check
        _
      $region10: #{tpu_custom_call.1} parent=5 // pred_check_branch
        %184 = sbr.rel (%p181) target = $region12
      $region11: #{tpu_custom_call.1} parent=5 // pred_region
        %s185 = ssub.s32 %s29, 1
      $region12: #{tpu_custom_call.1} parent=5 // pred_fallthru
        _
      %p186 = scmp.lt.s32.totalorder %s29, 6
      // Predicated region
      $region13: #{tpu_custom_call.1} parent=5 // pred_check
        %p187 = pneg %p186
      $region14: #{tpu_custom_call.1} parent=5 // pred_check_branch
        %189 = sbr.rel (%p187) target = $region16
      $region15: #{tpu_custom_call.1} parent=5 // pred_region
        // Predicated region
        $region17: #{tpu_custom_call.1} parent=15 // pred_check
          %p190 = pneg %p73
        $region18: #{tpu_custom_call.1} parent=15 // pred_check_branch
          %192 = sbr.rel (%p190) target = $region20
        $region19: #{tpu_custom_call.1} parent=15 // pred_region
          %s193 = sld [smem:[#allocation5 + %s36]]
          %s194 = sadd.s32 %s193, %s37
          %s195 = sld [smem:[#allocation6 + %s36]]
          %p196 = scmp.lt.s32.totalorder %s194, %s195
          %s197 = scalar_select %p196, %s194, %s195
          %p198 = scmp.lt.s32.totalorder %s36, 5
          %s199 = scalar_select %p198, %s36, 5
          %p200 = scmp.lt.s32.totalorder %s197, 0
          %s201 = scalar_select %p200, %s197, 0
          %s202 = sadd.s32 %s201, %s199
          %s203 = smul.addr %s202, 4
          %s204 = scalar_lea.vmem %s3, %s203
          %s205 = sld [smem:[#allocation5 + %s36]]
          %s206 = sadd.s32 %s205, %s37
          %s207 = sld [smem:[#allocation6 + %s36]]
          %p208 = scmp.lt.s32.totalorder %s206, %s207
          %s209 = scalar_select %p208, %s206, %s207
        $region20: #{tpu_custom_call.1} parent=15 // pred_fallthru
          _
        // Predicated region
        $region21: #{tpu_custom_call.1} parent=15 // pred_check
          %p210 = pneg %p99
        $region22: #{tpu_custom_call.1} parent=15 // pred_check_branch
          %212 = sbr.rel (%p210) target = $region24
        $region23: #{tpu_custom_call.1} parent=15 // pred_region
          %p213 = scmp.lt.s32.totalorder %s36, 5
          %s214 = scalar_select %p213, %s36, 5
          %s215 = smul.addr %s214, 2
          %s216 = smul.addr %s215, 8
          %s217 = scalar_lea.vmem %s4, %s216
        $region24: #{tpu_custom_call.1} parent=15 // pred_fallthru
          _
        // Predicated region
        $region25: #{tpu_custom_call.1} parent=15 // pred_check
          %p218 = pneg %p139
        $region26: #{tpu_custom_call.1} parent=15 // pred_check_branch
          %220 = sbr.rel (%p218) target = $region28
        $region27: #{tpu_custom_call.1} parent=15 // pred_region
          %s221 = sand.u32 %s129, 1
          %s222 = scalar_lea.sflag [#allocation8], %s221
          %s223 = sand.u32 %s129, 1
          %s224 = smul.addr %s223, 128
          %s225 = scalar_lea.vmem [#allocation7], %s224
          %s226 = sld [smem:[#allocation4 + %s36]]
          %s227 = sld [smem:[#allocation5 + %s36]]
          %s228 = sadd.s32 %s227, %s37
          %s229 = sld [smem:[#allocation6 + %s36]]
          %p230 = scmp.lt.s32.totalorder %s228, %s229
          %s231 = scalar_select %p230, %s228, %s229
          %s232 = smul.u32 2, %s231
          %s234 = ssub.s32 2048, 2048
          %235 = vsyncadd %s222, %s234
          %s236 = smul.addr %s226, 16
          %s237 = sadd.s32 %s232, %s236
          %s238 = smul.addr %s237, 128
          %s239 = scalar_lea.hbm %s5, %s238
          %s240 = sshll.u32 %s225, 4
          %s241 = int_to_ptr.vmem [resolvable:$true] %s240
          %246 = dma.hbm_to_vmem [thread:$0]  %s239, 2048, %s241, %s222, 128, 128, 8
        $region28: #{tpu_custom_call.1} parent=15 // pred_fallthru
          _
      $region16: #{tpu_custom_call.1} parent=5 // pred_fallthru
        _
      %p247 = scmp.le.s32.totalorder 1, %s29
      %p248 = scmp.lt.s32.totalorder %s29, 7
      %p249 = pnand %p247, %p248
      %p250 = pneg %p249
      // Predicated region
      $region29: #{tpu_custom_call.1} parent=5 // pred_check
        _
      $region30: #{tpu_custom_call.1} parent=5 // pred_check_branch
        %252 = sbr.rel (%p249) target = $region32
      $region31: #{tpu_custom_call.1} parent=5 // pred_region
        %s253 = ssub.s32 %s29, 1
        %s254 = sand.u32 %s132, 1
        %s255 = scalar_lea.sflag [#allocation8], %s254
        %s256 = sand.u32 %s132, 1
        %s257 = smul.addr %s256, 128
        %s258 = scalar_lea.vmem [#allocation7], %s257
        // Predicated region
        $region33: #{tpu_custom_call.1} parent=31 // pred_check
          %p259 = pneg %p145
        $region34: #{tpu_custom_call.1} parent=31 // pred_check_branch
          %261 = sbr.rel (%p259) target = $region36
        $region35: #{tpu_custom_call.1} parent=31 // pred_region
          %262 = dma.done %s255, 2048
        $region36: #{tpu_custom_call.1} parent=31 // pred_fallthru
          _
        %s263 = sld [smem:[#allocation5 + %s38]]
        %s264 = sadd.s32 %s263, %s39
        %s265 = sld [smem:[#allocation6 + %s38]]
        %p266 = scmp.lt.s32.totalorder %s264, %s265
        %s267 = scalar_select %p266, %s264, %s265
        %p268 = scmp.lt.s32.totalorder %s38, 5
        %s269 = scalar_select %p268, %s38, 5
        %p270 = scmp.lt.s32.totalorder %s267, 0
        %s271 = scalar_select %p270, %s267, 0
        %s272 = sadd.s32 %s271, %s269
        %s273 = smul.addr %s272, 4
        %s274 = scalar_lea.vmem %s3, %s273
        %p275 = pneg %p79
        %p276 = pneg %p76
        %p277 = scmp.lt.s32.totalorder %s38, 5
        %s278 = scalar_select %p277, %s38, 5
        %s279 = smul.addr %s278, 2
        %s280 = smul.addr %s279, 8
        %s281 = scalar_lea.vmem %s4, %s280
        %p282 = pneg %p105
        %p283 = pneg %p102
        %s284 = sand.u32 %s132, 1
        %s285 = scalar_lea.sflag [#allocation8], %s284
        %s286 = sand.u32 %s132, 1
        %s287 = smul.addr %s286, 128
        %s288 = scalar_lea.vmem [#allocation7], %s287
        %p289 = pneg %p145
        %p290 = pneg %p142
        %p291 = pneg %p171
        %p292 = pneg %p168
        %p293 = scmp.lt.s32.totalorder %s38, 5
        %s294 = scalar_select %p293, %s38, 5
        %s295 = smul.addr %s294, 8
        %s296 = smul.addr %s295, 4
        %s297 = scalar_lea.vmem %s6, %s296
        %s298 = sld [smem:[#allocation5 + %s38]]
        %s299 = sadd.s32 %s298, %s39
        %s300 = sld [smem:[#allocation6 + %s38]]
        %p301 = scmp.lt.s32.totalorder %s299, %s300
        %s302 = scalar_select %p301, %s299, %s300
        %p303 = scmp.lt.s32.totalorder %s38, 5
        %s304 = scalar_select %p303, %s38, 5
        %p305 = scmp.lt.s32.totalorder %s302, 0
        %s306 = scalar_select %p305, %s302, 0
        %s307 = sadd.s32 %s306, %s304
        %s308 = smul.addr %s307, 4
        %s309 = scalar_lea.vmem %s3, %s308
        %s310 = sld [smem:[#allocation5 + %s38]]
        %s311 = sadd.s32 %s310, %s39
        %s312 = sld [smem:[#allocation6 + %s38]]
        %p313 = scmp.lt.s32.totalorder %s311, %s312
        %s314 = scalar_select %p313, %s311, %s312
        %p315 = scmp.lt.s32.totalorder %s38, 5
        %s316 = scalar_select %p315, %s38, 5
        %s317 = smul.addr %s316, 2
        %s318 = smul.addr %s317, 8
        %s319 = scalar_lea.vmem %s4, %s318
        %s320 = sld [smem:[#allocation4 + %s38]]
        %s321 = sld [smem:[#allocation5 + %s38]]
        %s322 = sadd.s32 %s321, %s39
        %s323 = sld [smem:[#allocation6 + %s38]]
        %p324 = scmp.lt.s32.totalorder %s322, %s323
        %s325 = scalar_select %p324, %s322, %s323
        %s326 = smul.u32 2, %s325
        %p327 = scmp.lt.s32.totalorder %s38, 5
        %s328 = scalar_select %p327, %s38, 5
        %s329 = smul.addr %s328, 8
        %s330 = smul.addr %s329, 4
        %s331 = scalar_lea.vmem %s6, %s330
        %p332 = scmp.eq.s32.totalorder %s39, 0
        // Predicated region
        $region37: #{tpu_custom_call.1} parent=31 // pred_check
          %p333 = pneg %p332
        $region38: #{tpu_custom_call.1} parent=31 // pred_check_branch
          %335 = sbr.rel (%p333) target = $region40
        $region39: #{tpu_custom_call.1} parent=31 // pred_region
          %vm336 = vcmask 125952
          %337 = vst.msk [vmem:[#allocation2] sm:$0xf] %vm336, 0.0
          %338 = vst.msk [vmem:[#allocation2 + $0x4] sm:$0xf] %vm336, 0.0
          %339 = vst.msk [vmem:[#allocation2 + $0x8] sm:$0xf] %vm336, 0.0
          %340 = vst.msk [vmem:[#allocation2 + $0xc] sm:$0xf] %vm336, 0.0
          %341 = vst.msk [vmem:[#allocation2 + $0x10] sm:$0xf] %vm336, 0.0
          %342 = vst.msk [vmem:[#allocation2 + $0x14] sm:$0xf] %vm336, 0.0
          %343 = vst.msk [vmem:[#allocation2 + $0x18] sm:$0xf] %vm336, 0.0
          %344 = vst.msk [vmem:[#allocation2 + $0x1c] sm:$0xf] %vm336, 0.0
        $region40: #{tpu_custom_call.1} parent=31 // pred_fallthru
          _
        %s345 = sld [smem:[#allocation5 + %s38]]
        %s346 = sadd.s32 %s345, %s39
        %s347 = sld [smem:[#allocation6 + %s38]]
        %p348 = scmp.le.s32.totalorder %s346, %s347
        // Predicated region
        $region41: #{tpu_custom_call.1} parent=31 // pred_check
          %p349 = pneg %p348
        $region42: #{tpu_custom_call.1} parent=31 // pred_check_branch
          %351 = sbr.rel (%p349) target = $region44
        $region43: #{tpu_custom_call.1} parent=31 // pred_region
          %v352 = vld [vmem:[%s258] sm:$0xff]
          %v353 = vld [vmem:[%s258 + $0x8] sm:$0xff]
          %v354 = vld [vmem:[%s258 + $0x10] sm:$0xff]
          %v355 = vld [vmem:[%s258 + $0x18] sm:$0xff]
          %v356 = vld [vmem:[%s258 + $0x20] sm:$0xff]
          %v357 = vld [vmem:[%s258 + $0x28] sm:$0xff]
          %v358 = vld [vmem:[%s258 + $0x30] sm:$0xff]
          %v359 = vld [vmem:[%s258 + $0x38] sm:$0xff]
          %v360 = vld [vmem:[%s258 + $0x40] sm:$0xff]
          %v361 = vld [vmem:[%s258 + $0x48] sm:$0xff]
          %v362 = vld [vmem:[%s258 + $0x50] sm:$0xff]
          %v363 = vld [vmem:[%s258 + $0x58] sm:$0xff]
          %v364 = vld [vmem:[%s258 + $0x60] sm:$0xff]
          %v365 = vld [vmem:[%s258 + $0x68] sm:$0xff]
          %v366 = vld [vmem:[%s258 + $0x70] sm:$0xff]
          %v367 = vld [vmem:[%s258 + $0x78] sm:$0xff]
          %v368 = vld [vmem:[%s309] sm:$0xf]
          %v369 = vld [vmem:[#allocation2] sm:$0xf]
          %v370 = vld [vmem:[#allocation2 + $0x4] sm:$0xf]
          %v371 = vld [vmem:[#allocation2 + $0x8] sm:$0xf]
          %v372 = vld [vmem:[#allocation2 + $0xc] sm:$0xf]
          %v373 = vld [vmem:[#allocation2 + $0x10] sm:$0xf]
          %v374 = vld [vmem:[#allocation2 + $0x14] sm:$0xf]
          %v375 = vld [vmem:[#allocation2 + $0x18] sm:$0xf]
          %v376 = vld [vmem:[#allocation2 + $0x1c] sm:$0xf]
          %vm377 = vcmask 130048
          %v379 = vsel %vm377, %v368, 0
          %381 = vmatprep.subr.mxu0 0.0
          %382 = vmatpush1.msra.mxu0 %v352
          %383 = vmatprep.subr.mxu0 0.0
          %384 = vmatpush1.msra.mxu0 %v353
          %385 = vmatprep.subr.mxu0 0.0
          %386 = vmatpush1.msra.mxu0 0.0
          %387 = vmatprep.subr.mxu0 0.0
          %388 = vmatpush1.msra.mxu0 0.0
          %389 = vmatprep.subr.mxu0 0.0
          %390 = vmatpush1.msra.mxu0 0.0
          %391 = vmatprep.subr.mxu0 0.0
          %392 = vmatpush1.msra.mxu0 0.0
          %393 = vmatprep.subr.mxu0 0.0
          %394 = vmatpush1.msra.mxu0 0.0
          %395 = vmatprep.subr.mxu0 0.0
          %396 = vmatpush1.msra.mxu0 0.0
          %397 = vmatprep.subr.mxu0 0.0
          %398 = vmatpush1.msra.mxu0 0.0
          %399 = vmatprep.subr.mxu0 0.0
          %400 = vmatpush1.msra.mxu0 0.0
          %401 = vmatprep.subr.mxu0 0.0
          %402 = vmatpush1.msra.mxu0 0.0
          %403 = vmatprep.subr.mxu0 0.0
          %404 = vmatpush1.msra.mxu0 0.0
          %405 = vmatprep.subr.mxu0 0.0
          %406 = vmatpush1.msra.mxu0 0.0
          %407 = vmatprep.subr.mxu0 0.0
          %408 = vmatpush1.msra.mxu0 0.0
          %409 = vmatprep.subr.mxu0 0.0
          %410 = vmatpush1.msra.mxu0 0.0
          %411 = vmatprep.subr.mxu0 0.0
          %412 = vmatpush1.msra.mxu0 0.0
          %413 = vmatprep.subr.mxu0 0.0
          %414 = vmatpush1.msra.mxu0 0.0
          %415 = vmatprep.subr.mxu0 0.0
          %416 = vmatpush1.msra.mxu0 0.0
          %417 = vmatprep.subr.mxu0 0.0
          %418 = vmatpush1.msra.mxu0 0.0
          %419 = vmatprep.subr.mxu0 0.0
          %420 = vmatpush1.msra.mxu0 0.0
          %421 = vmatprep.subr.mxu0 0.0
          %422 = vmatpush1.msra.mxu0 0.0
          %423 = vmatprep.subr.mxu0 0.0
          %424 = vmatpush1.msra.mxu0 0.0
          %425 = vmatprep.subr.mxu0 0.0
          %426 = vmatpush1.msra.mxu0 0.0
          %427 = vmatprep.subr.mxu0 0.0
          %428 = vmatpush1.msra.mxu0 0.0
          %429 = vmatprep.subr.mxu0 0.0
          %430 = vmatpush1.msra.mxu0 0.0
          %431 = vmatprep.subr.mxu0 0.0
          %432 = vmatpush1.msra.mxu0 0.0
          %433 = vmatprep.subr.mxu0 0.0
          %434 = vmatpush1.msra.mxu0 0.0
          %435 = vmatprep.subr.mxu0 0.0
          %436 = vmatpush1.msra.mxu0 0.0
          %437 = vmatprep.subr.mxu0 0.0
          %438 = vmatpush1.msra.mxu0 0.0
          %439 = vmatprep.subr.mxu0 0.0
          %440 = vmatpush1.msra.mxu0 0.0
          %441 = vmatprep.subr.mxu0 0.0
          %442 = vmatpush1.msra.mxu0 0.0
          %443 = vmatprep.subr.mxu0 0.0
          %444 = vmatpush1.msra.mxu0 0.0
          %445 = vmatprep.mubr.f32.mxu0 0.0
          %446 = vmatmul.mubr.f32.gmra.mrb[0].mxu0 %v379
          %v447 = vpop.f32.mrb[0].mxu0
          %v448 = vadd.f32 0.0, %v447
          %v449 = vpop.f32.mrb[0].mxu0
          %450 = vdwg.mxu0
          %451 = vmatprep.subr.mxu0 0.0
          %452 = vmatpush1.msra.mxu0 %v354
          %453 = vmatprep.subr.mxu0 0.0
          %454 = vmatpush1.msra.mxu0 %v355
          %455 = vmatprep.subr.mxu0 0.0
          %456 = vmatpush1.msra.mxu0 0.0
          %457 = vmatprep.subr.mxu0 0.0
          %458 = vmatpush1.msra.mxu0 0.0
          %459 = vmatprep.subr.mxu0 0.0
          %460 = vmatpush1.msra.mxu0 0.0
          %461 = vmatprep.subr.mxu0 0.0
          %462 = vmatpush1.msra.mxu0 0.0
          %463 = vmatprep.subr.mxu0 0.0
          %464 = vmatpush1.msra.mxu0 0.0
          %465 = vmatprep.subr.mxu0 0.0
          %466 = vmatpush1.msra.mxu0 0.0
          %467 = vmatprep.subr.mxu0 0.0
          %468 = vmatpush1.msra.mxu0 0.0
          %469 = vmatprep.subr.mxu0 0.0
          %470 = vmatpush1.msra.mxu0 0.0
          %471 = vmatprep.subr.mxu0 0.0
          %472 = vmatpush1.msra.mxu0 0.0
          %473 = vmatprep.subr.mxu0 0.0
          %474 = vmatpush1.msra.mxu0 0.0
          %475 = vmatprep.subr.mxu0 0.0
          %476 = vmatpush1.msra.mxu0 0.0
          %477 = vmatprep.subr.mxu0 0.0
          %478 = vmatpush1.msra.mxu0 0.0
          %479 = vmatprep.subr.mxu0 0.0
          %480 = vmatpush1.msra.mxu0 0.0
          %481 = vmatprep.subr.mxu0 0.0
          %482 = vmatpush1.msra.mxu0 0.0
          %483 = vmatprep.subr.mxu0 0.0
          %484 = vmatpush1.msra.mxu0 0.0
          %485 = vmatprep.subr.mxu0 0.0
          %486 = vmatpush1.msra.mxu0 0.0
          %487 = vmatprep.subr.mxu0 0.0
          %488 = vmatpush1.msra.mxu0 0.0
          %489 = vmatprep.subr.mxu0 0.0
          %490 = vmatpush1.msra.mxu0 0.0
          %491 = vmatprep.subr.mxu0 0.0
          %492 = vmatpush1.msra.mxu0 0.0
          %493 = vmatprep.subr.mxu0 0.0
          %494 = vmatpush1.msra.mxu0 0.0
          %495 = vmatprep.subr.mxu0 0.0
          %496 = vmatpush1.msra.mxu0 0.0
          %497 = vmatprep.subr.mxu0 0.0
          %498 = vmatpush1.msra.mxu0 0.0
          %499 = vmatprep.subr.mxu0 0.0
          %500 = vmatpush1.msra.mxu0 0.0
          %501 = vmatprep.subr.mxu0 0.0
          %502 = vmatpush1.msra.mxu0 0.0
          %503 = vmatprep.subr.mxu0 0.0
          %504 = vmatpush1.msra.mxu0 0.0
          %505 = vmatprep.subr.mxu0 0.0
          %506 = vmatpush1.msra.mxu0 0.0
          %507 = vmatprep.subr.mxu0 0.0
          %508 = vmatpush1.msra.mxu0 0.0
          %509 = vmatprep.subr.mxu0 0.0
          %510 = vmatpush1.msra.mxu0 0.0
          %511 = vmatprep.subr.mxu0 0.0
          %512 = vmatpush1.msra.mxu0 0.0
          %513 = vmatprep.subr.mxu0 0.0
          %514 = vmatpush1.msra.mxu0 0.0
          %515 = vmatprep.mubr.f32.mxu0 0.0
          %516 = vmatmul.mubr.f32.gmra.mrb[0].mxu0 %v379
          %v517 = vpop.f32.mrb[0].mxu0
          %v518 = vadd.f32 0.0, %v517
          %v519 = vpop.f32.mrb[0].mxu0
          %520 = vdwg.mxu0
          %521 = vmatprep.subr.mxu0 0.0
          %522 = vmatpush1.msra.mxu0 %v356
          %523 = vmatprep.subr.mxu0 0.0
          %524 = vmatpush1.msra.mxu0 %v357
          %525 = vmatprep.subr.mxu0 0.0
          %526 = vmatpush1.msra.mxu0 0.0
          %527 = vmatprep.subr.mxu0 0.0
          %528 = vmatpush1.msra.mxu0 0.0
          %529 = vmatprep.subr.mxu0 0.0
          %530 = vmatpush1.msra.mxu0 0.0
          %531 = vmatprep.subr.mxu0 0.0
          %532 = vmatpush1.msra.mxu0 0.0
          %533 = vmatprep.subr.mxu0 0.0
          %534 = vmatpush1.msra.mxu0 0.0
          %535 = vmatprep.subr.mxu0 0.0
          %536 = vmatpush1.msra.mxu0 0.0
          %537 = vmatprep.subr.mxu0 0.0
          %538 = vmatpush1.msra.mxu0 0.0
          %539 = vmatprep.subr.mxu0 0.0
          %540 = vmatpush1.msra.mxu0 0.0
          %541 = vmatprep.subr.mxu0 0.0
          %542 = vmatpush1.msra.mxu0 0.0
          %543 = vmatprep.subr.mxu0 0.0
          %544 = vmatpush1.msra.mxu0 0.0
          %545 = vmatprep.subr.mxu0 0.0
          %546 = vmatpush1.msra.mxu0 0.0
          %547 = vmatprep.subr.mxu0 0.0
          %548 = vmatpush1.msra.mxu0 0.0
          %549 = vmatprep.subr.mxu0 0.0
          %550 = vmatpush1.msra.mxu0 0.0
          %551 = vmatprep.subr.mxu0 0.0
          %552 = vmatpush1.msra.mxu0 0.0
          %553 = vmatprep.subr.mxu0 0.0
          %554 = vmatpush1.msra.mxu0 0.0
          %555 = vmatprep.subr.mxu0 0.0
          %556 = vmatpush1.msra.mxu0 0.0
          %557 = vmatprep.subr.mxu0 0.0
          %558 = vmatpush1.msra.mxu0 0.0
          %559 = vmatprep.subr.mxu0 0.0
          %560 = vmatpush1.msra.mxu0 0.0
          %561 = vmatprep.subr.mxu0 0.0
          %562 = vmatpush1.msra.mxu0 0.0
          %563 = vmatprep.subr.mxu0 0.0
          %564 = vmatpush1.msra.mxu0 0.0
          %565 = vmatprep.subr.mxu0 0.0
          %566 = vmatpush1.msra.mxu0 0.0
          %567 = vmatprep.subr.mxu0 0.0
          %568 = vmatpush1.msra.mxu0 0.0
          %569 = vmatprep.subr.mxu0 0.0
          %570 = vmatpush1.msra.mxu0 0.0
          %571 = vmatprep.subr.mxu0 0.0
          %572 = vmatpush1.msra.mxu0 0.0
          %573 = vmatprep.subr.mxu0 0.0
          %574 = vmatpush1.msra.mxu0 0.0
          %575 = vmatprep.subr.mxu0 0.0
          %576 = vmatpush1.msra.mxu0 0.0
          %577 = vmatprep.subr.mxu0 0.0
          %578 = vmatpush1.msra.mxu0 0.0
          %579 = vmatprep.subr.mxu0 0.0
          %580 = vmatpush1.msra.mxu0 0.0
          %581 = vmatprep.subr.mxu0 0.0
          %582 = vmatpush1.msra.mxu0 0.0
          %583 = vmatprep.subr.mxu0 0.0
          %584 = vmatpush1.msra.mxu0 0.0
          %585 = vmatprep.mubr.f32.mxu0 0.0
          %586 = vmatmul.mubr.f32.gmra.mrb[0].mxu0 %v379
          %v587 = vpop.f32.mrb[0].mxu0
          %v588 = vadd.f32 0.0, %v587
          %v589 = vpop.f32.mrb[0].mxu0
          %590 = vdwg.mxu0
          %591 = vmatprep.subr.mxu0 0.0
          %592 = vmatpush1.msra.mxu0 %v358
          %593 = vmatprep.subr.mxu0 0.0
          %594 = vmatpush1.msra.mxu0 %v359
          %595 = vmatprep.subr.mxu0 0.0
          %596 = vmatpush1.msra.mxu0 0.0
          %597 = vmatprep.subr.mxu0 0.0
          %598 = vmatpush1.msra.mxu0 0.0
          %599 = vmatprep.subr.mxu0 0.0
          %600 = vmatpush1.msra.mxu0 0.0
          %601 = vmatprep.subr.mxu0 0.0
          %602 = vmatpush1.msra.mxu0 0.0
          %603 = vmatprep.subr.mxu0 0.0
          %604 = vmatpush1.msra.mxu0 0.0
          %605 = vmatprep.subr.mxu0 0.0
          %606 = vmatpush1.msra.mxu0 0.0
          %607 = vmatprep.subr.mxu0 0.0
          %608 = vmatpush1.msra.mxu0 0.0
          %609 = vmatprep.subr.mxu0 0.0
          %610 = vmatpush1.msra.mxu0 0.0
          %611 = vmatprep.subr.mxu0 0.0
          %612 = vmatpush1.msra.mxu0 0.0
          %613 = vmatprep.subr.mxu0 0.0
          %614 = vmatpush1.msra.mxu0 0.0
          %615 = vmatprep.subr.mxu0 0.0
          %616 = vmatpush1.msra.mxu0 0.0
          %617 = vmatprep.subr.mxu0 0.0
          %618 = vmatpush1.msra.mxu0 0.0
          %619 = vmatprep.subr.mxu0 0.0
          %620 = vmatpush1.msra.mxu0 0.0
          %621 = vmatprep.subr.mxu0 0.0
          %622 = vmatpush1.msra.mxu0 0.0
          %623 = vmatprep.subr.mxu0 0.0
          %624 = vmatpush1.msra.mxu0 0.0
          %625 = vmatprep.subr.mxu0 0.0
          %626 = vmatpush1.msra.mxu0 0.0
          %627 = vmatprep.subr.mxu0 0.0
          %628 = vmatpush1.msra.mxu0 0.0
          %629 = vmatprep.subr.mxu0 0.0
          %630 = vmatpush1.msra.mxu0 0.0
          %631 = vmatprep.subr.mxu0 0.0
          %632 = vmatpush1.msra.mxu0 0.0
          %633 = vmatprep.subr.mxu0 0.0
          %634 = vmatpush1.msra.mxu0 0.0
          %635 = vmatprep.subr.mxu0 0.0
          %636 = vmatpush1.msra.mxu0 0.0
          %637 = vmatprep.subr.mxu0 0.0
          %638 = vmatpush1.msra.mxu0 0.0
          %639 = vmatprep.subr.mxu0 0.0
          %640 = vmatpush1.msra.mxu0 0.0
          %641 = vmatprep.subr.mxu0 0.0
          %642 = vmatpush1.msra.mxu0 0.0
          %643 = vmatprep.subr.mxu0 0.0
          %644 = vmatpush1.msra.mxu0 0.0
          %645 = vmatprep.subr.mxu0 0.0
          %646 = vmatpush1.msra.mxu0 0.0
          %647 = vmatprep.subr.mxu0 0.0
          %648 = vmatpush1.msra.mxu0 0.0
          %649 = vmatprep.subr.mxu0 0.0
          %650 = vmatpush1.msra.mxu0 0.0
          %651 = vmatprep.subr.mxu0 0.0
          %652 = vmatpush1.msra.mxu0 0.0
          %653 = vmatprep.subr.mxu0 0.0
          %654 = vmatpush1.msra.mxu0 0.0
          %655 = vmatprep.mubr.f32.mxu0 0.0
          %656 = vmatmul.mubr.f32.gmra.mrb[0].mxu0 %v379
          %v657 = vpop.f32.mrb[0].mxu0
          %v658 = vadd.f32 0.0, %v657
          %v659 = vpop.f32.mrb[0].mxu0
          %660 = vdwg.mxu0
          %661 = vmatprep.subr.mxu0 0.0
          %662 = vmatpush1.msra.mxu0 %v360
          %663 = vmatprep.subr.mxu0 0.0
          %664 = vmatpush1.msra.mxu0 %v361
          %665 = vmatprep.subr.mxu0 0.0
          %666 = vmatpush1.msra.mxu0 0.0
          %667 = vmatprep.subr.mxu0 0.0
          %668 = vmatpush1.msra.mxu0 0.0
          %669 = vmatprep.subr.mxu0 0.0
          %670 = vmatpush1.msra.mxu0 0.0
          %671 = vmatprep.subr.mxu0 0.0
          %672 = vmatpush1.msra.mxu0 0.0
          %673 = vmatprep.subr.mxu0 0.0
          %674 = vmatpush1.msra.mxu0 0.0
          %675 = vmatprep.subr.mxu0 0.0
          %676 = vmatpush1.msra.mxu0 0.0
          %677 = vmatprep.subr.mxu0 0.0
          %678 = vmatpush1.msra.mxu0 0.0
          %679 = vmatprep.subr.mxu0 0.0
          %680 = vmatpush1.msra.mxu0 0.0
          %681 = vmatprep.subr.mxu0 0.0
          %682 = vmatpush1.msra.mxu0 0.0
          %683 = vmatprep.subr.mxu0 0.0
          %684 = vmatpush1.msra.mxu0 0.0
          %685 = vmatprep.subr.mxu0 0.0
          %686 = vmatpush1.msra.mxu0 0.0
          %687 = vmatprep.subr.mxu0 0.0
          %688 = vmatpush1.msra.mxu0 0.0
          %689 = vmatprep.subr.mxu0 0.0
          %690 = vmatpush1.msra.mxu0 0.0
          %691 = vmatprep.subr.mxu0 0.0
          %692 = vmatpush1.msra.mxu0 0.0
          %693 = vmatprep.subr.mxu0 0.0
          %694 = vmatpush1.msra.mxu0 0.0
          %695 = vmatprep.subr.mxu0 0.0
          %696 = vmatpush1.msra.mxu0 0.0
          %697 = vmatprep.subr.mxu0 0.0
          %698 = vmatpush1.msra.mxu0 0.0
          %699 = vmatprep.subr.mxu0 0.0
          %700 = vmatpush1.msra.mxu0 0.0
          %701 = vmatprep.subr.mxu0 0.0
          %702 = vmatpush1.msra.mxu0 0.0
          %703 = vmatprep.subr.mxu0 0.0
          %704 = vmatpush1.msra.mxu0 0.0
          %705 = vmatprep.subr.mxu0 0.0
          %706 = vmatpush1.msra.mxu0 0.0
          %707 = vmatprep.subr.mxu0 0.0
          %708 = vmatpush1.msra.mxu0 0.0
          %709 = vmatprep.subr.mxu0 0.0
          %710 = vmatpush1.msra.mxu0 0.0
          %711 = vmatprep.subr.mxu0 0.0
          %712 = vmatpush1.msra.mxu0 0.0
          %713 = vmatprep.subr.mxu0 0.0
          %714 = vmatpush1.msra.mxu0 0.0
          %715 = vmatprep.subr.mxu0 0.0
          %716 = vmatpush1.msra.mxu0 0.0
          %717 = vmatprep.subr.mxu0 0.0
          %718 = vmatpush1.msra.mxu0 0.0
          %719 = vmatprep.subr.mxu0 0.0
          %720 = vmatpush1.msra.mxu0 0.0
          %721 = vmatprep.subr.mxu0 0.0
          %722 = vmatpush1.msra.mxu0 0.0
          %723 = vmatprep.subr.mxu0 0.0
          %724 = vmatpush1.msra.mxu0 0.0
          %725 = vmatprep.mubr.f32.mxu0 0.0
          %726 = vmatmul.mubr.f32.gmra.mrb[0].mxu0 %v379
          %v727 = vpop.f32.mrb[0].mxu0
          %v728 = vadd.f32 0.0, %v727
          %v729 = vpop.f32.mrb[0].mxu0
          %730 = vdwg.mxu0
          %731 = vmatprep.subr.mxu0 0.0
          %732 = vmatpush1.msra.mxu0 %v362
          %733 = vmatprep.subr.mxu0 0.0
          %734 = vmatpush1.msra.mxu0 %v363
          %735 = vmatprep.subr.mxu0 0.0
          %736 = vmatpush1.msra.mxu0 0.0
          %737 = vmatprep.subr.mxu0 0.0
          %738 = vmatpush1.msra.mxu0 0.0
          %739 = vmatprep.subr.mxu0 0.0
          %740 = vmatpush1.msra.mxu0 0.0
          %741 = vmatprep.subr.mxu0 0.0
          %742 = vmatpush1.msra.mxu0 0.0
          %743 = vmatprep.subr.mxu0 0.0
          %744 = vmatpush1.msra.mxu0 0.0
          %745 = vmatprep.subr.mxu0 0.0
          %746 = vmatpush1.msra.mxu0 0.0
          %747 = vmatprep.subr.mxu0 0.0
          %748 = vmatpush1.msra.mxu0 0.0
          %749 = vmatprep.subr.mxu0 0.0
          %750 = vmatpush1.msra.mxu0 0.0
          %751 = vmatprep.subr.mxu0 0.0
          %752 = vmatpush1.msra.mxu0 0.0
          %753 = vmatprep.subr.mxu0 0.0
          %754 = vmatpush1.msra.mxu0 0.0
          %755 = vmatprep.subr.mxu0 0.0
          %756 = vmatpush1.msra.mxu0 0.0
          %757 = vmatprep.subr.mxu0 0.0
          %758 = vmatpush1.msra.mxu0 0.0
          %759 = vmatprep.subr.mxu0 0.0
          %760 = vmatpush1.msra.mxu0 0.0
          %761 = vmatprep.subr.mxu0 0.0
          %762 = vmatpush1.msra.mxu0 0.0
          %763 = vmatprep.subr.mxu0 0.0
          %764 = vmatpush1.msra.mxu0 0.0
          %765 = vmatprep.subr.mxu0 0.0
          %766 = vmatpush1.msra.mxu0 0.0
          %767 = vmatprep.subr.mxu0 0.0
          %768 = vmatpush1.msra.mxu0 0.0
          %769 = vmatprep.subr.mxu0 0.0
          %770 = vmatpush1.msra.mxu0 0.0
          %771 = vmatprep.subr.mxu0 0.0
          %772 = vmatpush1.msra.mxu0 0.0
          %773 = vmatprep.subr.mxu0 0.0
          %774 = vmatpush1.msra.mxu0 0.0
          %775 = vmatprep.subr.mxu0 0.0
          %776 = vmatpush1.msra.mxu0 0.0
          %777 = vmatprep.subr.mxu0 0.0
          %778 = vmatpush1.msra.mxu0 0.0
          %779 = vmatprep.subr.mxu0 0.0
          %780 = vmatpush1.msra.mxu0 0.0
          %781 = vmatprep.subr.mxu0 0.0
          %782 = vmatpush1.msra.mxu0 0.0
          %783 = vmatprep.subr.mxu0 0.0
          %784 = vmatpush1.msra.mxu0 0.0
          %785 = vmatprep.subr.mxu0 0.0
          %786 = vmatpush1.msra.mxu0 0.0
          %787 = vmatprep.subr.mxu0 0.0
          %788 = vmatpush1.msra.mxu0 0.0
          %789 = vmatprep.subr.mxu0 0.0
          %790 = vmatpush1.msra.mxu0 0.0
          %791 = vmatprep.subr.mxu0 0.0
          %792 = vmatpush1.msra.mxu0 0.0
          %793 = vmatprep.subr.mxu0 0.0
          %794 = vmatpush1.msra.mxu0 0.0
          %795 = vmatprep.mubr.f32.mxu0 0.0
          %796 = vmatmul.mubr.f32.gmra.mrb[0].mxu0 %v379
          %v797 = vpop.f32.mrb[0].mxu0
          %v798 = vadd.f32 0.0, %v797
          %v799 = vpop.f32.mrb[0].mxu0
          %800 = vdwg.mxu0
          %801 = vmatprep.subr.mxu0 0.0
          %802 = vmatpush1.msra.mxu0 %v364
          %803 = vmatprep.subr.mxu0 0.0
          %804 = vmatpush1.msra.mxu0 %v365
          %805 = vmatprep.subr.mxu0 0.0
          %806 = vmatpush1.msra.mxu0 0.0
          %807 = vmatprep.subr.mxu0 0.0
          %808 = vmatpush1.msra.mxu0 0.0
          %809 = vmatprep.subr.mxu0 0.0
          %810 = vmatpush1.msra.mxu0 0.0
          %811 = vmatprep.subr.mxu0 0.0
          %812 = vmatpush1.msra.mxu0 0.0
          %813 = vmatprep.subr.mxu0 0.0
          %814 = vmatpush1.msra.mxu0 0.0
          %815 = vmatprep.subr.mxu0 0.0
          %816 = vmatpush1.msra.mxu0 0.0
          %817 = vmatprep.subr.mxu0 0.0
          %818 = vmatpush1.msra.mxu0 0.0
          %819 = vmatprep.subr.mxu0 0.0
          %820 = vmatpush1.msra.mxu0 0.0
          %821 = vmatprep.subr.mxu0 0.0
          %822 = vmatpush1.msra.mxu0 0.0
          %823 = vmatprep.subr.mxu0 0.0
          %824 = vmatpush1.msra.mxu0 0.0
          %825 = vmatprep.subr.mxu0 0.0
          %826 = vmatpush1.msra.mxu0 0.0
          %827 = vmatprep.subr.mxu0 0.0
          %828 = vmatpush1.msra.mxu0 0.0
          %829 = vmatprep.subr.mxu0 0.0
          %830 = vmatpush1.msra.mxu0 0.0
          %831 = vmatprep.subr.mxu0 0.0
          %832 = vmatpush1.msra.mxu0 0.0
          %833 = vmatprep.subr.mxu0 0.0
          %834 = vmatpush1.msra.mxu0 0.0
          %835 = vmatprep.subr.mxu0 0.0
          %836 = vmatpush1.msra.mxu0 0.0
          %837 = vmatprep.subr.mxu0 0.0
          %838 = vmatpush1.msra.mxu0 0.0
          %839 = vmatprep.subr.mxu0 0.0
          %840 = vmatpush1.msra.mxu0 0.0
          %841 = vmatprep.subr.mxu0 0.0
          %842 = vmatpush1.msra.mxu0 0.0
          %843 = vmatprep.subr.mxu0 0.0
          %844 = vmatpush1.msra.mxu0 0.0
          %845 = vmatprep.subr.mxu0 0.0
          %846 = vmatpush1.msra.mxu0 0.0
          %847 = vmatprep.subr.mxu0 0.0
          %848 = vmatpush1.msra.mxu0 0.0
          %849 = vmatprep.subr.mxu0 0.0
          %850 = vmatpush1.msra.mxu0 0.0
          %851 = vmatprep.subr.mxu0 0.0
          %852 = vmatpush1.msra.mxu0 0.0
          %853 = vmatprep.subr.mxu0 0.0
          %854 = vmatpush1.msra.mxu0 0.0
          %855 = vmatprep.subr.mxu0 0.0
          %856 = vmatpush1.msra.mxu0 0.0
          %857 = vmatprep.subr.mxu0 0.0
          %858 = vmatpush1.msra.mxu0 0.0
          %859 = vmatprep.subr.mxu0 0.0
          %860 = vmatpush1.msra.mxu0 0.0
          %861 = vmatprep.subr.mxu0 0.0
          %862 = vmatpush1.msra.mxu0 0.0
          %863 = vmatprep.subr.mxu0 0.0
          %864 = vmatpush1.msra.mxu0 0.0
          %865 = vmatprep.mubr.f32.mxu0 0.0
          %866 = vmatmul.mubr.f32.gmra.mrb[0].mxu0 %v379
          %v867 = vpop.f32.mrb[0].mxu0
          %v868 = vadd.f32 0.0, %v867
          %v869 = vpop.f32.mrb[0].mxu0
          %870 = vdwg.mxu0
          %871 = vmatprep.subr.mxu0 0.0
          %872 = vmatpush1.msra.mxu0 %v366
          %873 = vmatprep.subr.mxu0 0.0
          %874 = vmatpush1.msra.mxu0 %v367
          %875 = vmatprep.subr.mxu0 0.0
          %876 = vmatpush1.msra.mxu0 0.0
          %877 = vmatprep.subr.mxu0 0.0
          %878 = vmatpush1.msra.mxu0 0.0
          %879 = vmatprep.subr.mxu0 0.0
          %880 = vmatpush1.msra.mxu0 0.0
          %881 = vmatprep.subr.mxu0 0.0
          %882 = vmatpush1.msra.mxu0 0.0
          %883 = vmatprep.subr.mxu0 0.0
          %884 = vmatpush1.msra.mxu0 0.0
          %885 = vmatprep.subr.mxu0 0.0
          %886 = vmatpush1.msra.mxu0 0.0
          %887 = vmatprep.subr.mxu0 0.0
          %888 = vmatpush1.msra.mxu0 0.0
          %889 = vmatprep.subr.mxu0 0.0
          %890 = vmatpush1.msra.mxu0 0.0
          %891 = vmatprep.subr.mxu0 0.0
          %892 = vmatpush1.msra.mxu0 0.0
          %893 = vmatprep.subr.mxu0 0.0
          %894 = vmatpush1.msra.mxu0 0.0
          %895 = vmatprep.subr.mxu0 0.0
          %896 = vmatpush1.msra.mxu0 0.0
          %897 = vmatprep.subr.mxu0 0.0
          %898 = vmatpush1.msra.mxu0 0.0
          %899 = vmatprep.subr.mxu0 0.0
          %900 = vmatpush1.msra.mxu0 0.0
          %901 = vmatprep.subr.mxu0 0.0
          %902 = vmatpush1.msra.mxu0 0.0
          %903 = vmatprep.subr.mxu0 0.0
          %904 = vmatpush1.msra.mxu0 0.0
          %905 = vmatprep.subr.mxu0 0.0
          %906 = vmatpush1.msra.mxu0 0.0
          %907 = vmatprep.subr.mxu0 0.0
          %908 = vmatpush1.msra.mxu0 0.0
          %909 = vmatprep.subr.mxu0 0.0
          %910 = vmatpush1.msra.mxu0 0.0
          %911 = vmatprep.subr.mxu0 0.0
          %912 = vmatpush1.msra.mxu0 0.0
          %913 = vmatprep.subr.mxu0 0.0
          %914 = vmatpush1.msra.mxu0 0.0
          %915 = vmatprep.subr.mxu0 0.0
          %916 = vmatpush1.msra.mxu0 0.0
          %917 = vmatprep.subr.mxu0 0.0
          %918 = vmatpush1.msra.mxu0 0.0
          %919 = vmatprep.subr.mxu0 0.0
          %920 = vmatpush1.msra.mxu0 0.0
          %921 = vmatprep.subr.mxu0 0.0
          %922 = vmatpush1.msra.mxu0 0.0
          %923 = vmatprep.subr.mxu0 0.0
          %924 = vmatpush1.msra.mxu0 0.0
          %925 = vmatprep.subr.mxu0 0.0
          %926 = vmatpush1.msra.mxu0 0.0
          %927 = vmatprep.subr.mxu0 0.0
          %928 = vmatpush1.msra.mxu0 0.0
          %929 = vmatprep.subr.mxu0 0.0
          %930 = vmatpush1.msra.mxu0 0.0
          %931 = vmatprep.subr.mxu0 0.0
          %932 = vmatpush1.msra.mxu0 0.0
          %933 = vmatprep.subr.mxu0 0.0
          %934 = vmatpush1.msra.mxu0 0.0
          %935 = vmatprep.mubr.f32.mxu0 0.0
          %936 = vmatmul.mubr.f32.gmra.mrb[0].mxu0 %v379
          %v937 = vpop.f32.mrb[0].mxu0
          %v938 = vadd.f32 0.0, %v937
          %v939 = vpop.f32.mrb[0].mxu0
          %940 = vdwg.mxu0
          %v941 = vadd.f32 %v369, %v448
          %v942 = vadd.f32 %v370, %v518
          %v943 = vadd.f32 %v371, %v588
          %v944 = vadd.f32 %v372, %v658
          %v945 = vadd.f32 %v373, %v728
          %v946 = vadd.f32 %v374, %v798
          %v947 = vadd.f32 %v375, %v868
          %v948 = vadd.f32 %v376, %v938
          %vm949 = vcmask 125952
          %950 = vst.msk [vmem:[#allocation2] sm:$0xf] %vm949, %v941
          %951 = vst.msk [vmem:[#allocation2 + $0x4] sm:$0xf] %vm949, %v942
          %952 = vst.msk [vmem:[#allocation2 + $0x8] sm:$0xf] %vm949, %v943
          %953 = vst.msk [vmem:[#allocation2 + $0xc] sm:$0xf] %vm949, %v944
          %954 = vst.msk [vmem:[#allocation2 + $0x10] sm:$0xf] %vm949, %v945
          %955 = vst.msk [vmem:[#allocation2 + $0x14] sm:$0xf] %vm949, %v946
          %956 = vst.msk [vmem:[#allocation2 + $0x18] sm:$0xf] %vm949, %v947
          %957 = vst.msk [vmem:[#allocation2 + $0x1c] sm:$0xf] %vm949, %v948
        $region44: #{tpu_custom_call.1} parent=31 // pred_fallthru
          _
        // Predicated region
        $region45: #{tpu_custom_call.1} parent=31 // pred_check
          %p958 = pneg %p332
        $region46: #{tpu_custom_call.1} parent=31 // pred_check_branch
          %960 = sbr.rel (%p958) target = $region48
        $region47: #{tpu_custom_call.1} parent=31 // pred_region
          %v961 = vld [vmem:[%s319] sm:$0xff]
          %v962 = vld [vmem:[%s319 + $0x8] sm:$0xff]
          %v963 = vld [vmem:[#allocation2] sm:$0xf]
          %v964 = vld [vmem:[#allocation2 + $0x4] sm:$0xf]
          %v965 = vld [vmem:[#allocation2 + $0x8] sm:$0xf]
          %v966 = vld [vmem:[#allocation2 + $0xc] sm:$0xf]
          %v967 = vld [vmem:[#allocation2 + $0x10] sm:$0xf]
          %v968 = vld [vmem:[#allocation2 + $0x14] sm:$0xf]
          %v969 = vld [vmem:[#allocation2 + $0x18] sm:$0xf]
          %v970 = vld [vmem:[#allocation2 + $0x1c] sm:$0xf]
          %vm971 = vcmask 130048
          %v973 = vsel %vm971, %v963, 0
          %975 = vmatprep.subr.mxu0 0.0
          %976 = vmatpush1.msra.mxu0 %v961
          %977 = vmatprep.subr.mxu0 0.0
          %978 = vmatpush1.msra.mxu0 %v962
          %979 = vmatprep.subr.mxu0 0.0
          %980 = vmatpush1.msra.mxu0 0.0
          %981 = vmatprep.subr.mxu0 0.0
          %982 = vmatpush1.msra.mxu0 0.0
          %983 = vmatprep.subr.mxu0 0.0
          %984 = vmatpush1.msra.mxu0 0.0
          %985 = vmatprep.subr.mxu0 0.0
          %986 = vmatpush1.msra.mxu0 0.0
          %987 = vmatprep.subr.mxu0 0.0
          %988 = vmatpush1.msra.mxu0 0.0
          %989 = vmatprep.subr.mxu0 0.0
          %990 = vmatpush1.msra.mxu0 0.0
          %991 = vmatprep.subr.mxu0 0.0
          %992 = vmatpush1.msra.mxu0 0.0
          %993 = vmatprep.subr.mxu0 0.0
          %994 = vmatpush1.msra.mxu0 0.0
          %995 = vmatprep.subr.mxu0 0.0
          %996 = vmatpush1.msra.mxu0 0.0
          %997 = vmatprep.subr.mxu0 0.0
          %998 = vmatpush1.msra.mxu0 0.0
          %999 = vmatprep.subr.mxu0 0.0
          %1000 = vmatpush1.msra.mxu0 0.0
          %1001 = vmatprep.subr.mxu0 0.0
          %1002 = vmatpush1.msra.mxu0 0.0
          %1003 = vmatprep.subr.mxu0 0.0
          %1004 = vmatpush1.msra.mxu0 0.0
          %1005 = vmatprep.subr.mxu0 0.0
          %1006 = vmatpush1.msra.mxu0 0.0
          %1007 = vmatprep.subr.mxu0 0.0
          %1008 = vmatpush1.msra.mxu0 0.0
          %1009 = vmatprep.subr.mxu0 0.0
          %1010 = vmatpush1.msra.mxu0 0.0
          %1011 = vmatprep.subr.mxu0 0.0
          %1012 = vmatpush1.msra.mxu0 0.0
          %1013 = vmatprep.subr.mxu0 0.0
          %1014 = vmatpush1.msra.mxu0 0.0
          %1015 = vmatprep.subr.mxu0 0.0
          %1016 = vmatpush1.msra.mxu0 0.0
          %1017 = vmatprep.subr.mxu0 0.0
          %1018 = vmatpush1.msra.mxu0 0.0
          %1019 = vmatprep.subr.mxu0 0.0
          %1020 = vmatpush1.msra.mxu0 0.0
          %1021 = vmatprep.subr.mxu0 0.0
          %1022 = vmatpush1.msra.mxu0 0.0
          %1023 = vmatprep.subr.mxu0 0.0
          %1024 = vmatpush1.msra.mxu0 0.0
          %1025 = vmatprep.subr.mxu0 0.0
          %1026 = vmatpush1.msra.mxu0 0.0
          %1027 = vmatprep.subr.mxu0 0.0
          %1028 = vmatpush1.msra.mxu0 0.0
          %1029 = vmatprep.subr.mxu0 0.0
          %1030 = vmatpush1.msra.mxu0 0.0
          %1031 = vmatprep.subr.mxu0 0.0
          %1032 = vmatpush1.msra.mxu0 0.0
          %1033 = vmatprep.subr.mxu0 0.0
          %1034 = vmatpush1.msra.mxu0 0.0
          %1035 = vmatprep.subr.mxu0 0.0
          %1036 = vmatpush1.msra.mxu0 0.0
          %1037 = vmatprep.subr.mxu0 0.0
          %1038 = vmatpush1.msra.mxu0 0.0
          %1039 = vmatprep.mubr.f32.mxu0 0.0
          %1040 = vmatmul.mubr.f32.gmra.mrb[0].mxu0 %v973
          %v1041 = vpop.f32.mrb[0].mxu0
          %v1042 = vadd.f32 0.0, %v1041
          %v1043 = vpop.f32.mrb[0].mxu0
          %1044 = vdwg.mxu0
          %v1046 = vsel %vm971, %v964, 0
          %1048 = vmatprep.subr.mxu0 0.0
          %1049 = vmatpush1.msra.mxu0 %v961
          %1050 = vmatprep.subr.mxu0 0.0
          %1051 = vmatpush1.msra.mxu0 %v962
          %1052 = vmatprep.subr.mxu0 0.0
          %1053 = vmatpush1.msra.mxu0 0.0
          %1054 = vmatprep.subr.mxu0 0.0
          %1055 = vmatpush1.msra.mxu0 0.0
          %1056 = vmatprep.subr.mxu0 0.0
          %1057 = vmatpush1.msra.mxu0 0.0
          %1058 = vmatprep.subr.mxu0 0.0
          %1059 = vmatpush1.msra.mxu0 0.0
          %1060 = vmatprep.subr.mxu0 0.0
          %1061 = vmatpush1.msra.mxu0 0.0
          %1062 = vmatprep.subr.mxu0 0.0
          %1063 = vmatpush1.msra.mxu0 0.0
          %1064 = vmatprep.subr.mxu0 0.0
          %1065 = vmatpush1.msra.mxu0 0.0
          %1066 = vmatprep.subr.mxu0 0.0
          %1067 = vmatpush1.msra.mxu0 0.0
          %1068 = vmatprep.subr.mxu0 0.0
          %1069 = vmatpush1.msra.mxu0 0.0
          %1070 = vmatprep.subr.mxu0 0.0
          %1071 = vmatpush1.msra.mxu0 0.0
          %1072 = vmatprep.subr.mxu0 0.0
          %1073 = vmatpush1.msra.mxu0 0.0
          %1074 = vmatprep.subr.mxu0 0.0
          %1075 = vmatpush1.msra.mxu0 0.0
          %1076 = vmatprep.subr.mxu0 0.0
          %1077 = vmatpush1.msra.mxu0 0.0
          %1078 = vmatprep.subr.mxu0 0.0
          %1079 = vmatpush1.msra.mxu0 0.0
          %1080 = vmatprep.subr.mxu0 0.0
          %1081 = vmatpush1.msra.mxu0 0.0
          %1082 = vmatprep.subr.mxu0 0.0
          %1083 = vmatpush1.msra.mxu0 0.0
          %1084 = vmatprep.subr.mxu0 0.0
          %1085 = vmatpush1.msra.mxu0 0.0
          %1086 = vmatprep.subr.mxu0 0.0
          %1087 = vmatpush1.msra.mxu0 0.0
          %1088 = vmatprep.subr.mxu0 0.0
          %1089 = vmatpush1.msra.mxu0 0.0
          %1090 = vmatprep.subr.mxu0 0.0
          %1091 = vmatpush1.msra.mxu0 0.0
          %1092 = vmatprep.subr.mxu0 0.0
          %1093 = vmatpush1.msra.mxu0 0.0
          %1094 = vmatprep.subr.mxu0 0.0
          %1095 = vmatpush1.msra.mxu0 0.0
          %1096 = vmatprep.subr.mxu0 0.0
          %1097 = vmatpush1.msra.mxu0 0.0
          %1098 = vmatprep.subr.mxu0 0.0
          %1099 = vmatpush1.msra.mxu0 0.0
          %1100 = vmatprep.subr.mxu0 0.0
          %1101 = vmatpush1.msra.mxu0 0.0
          %1102 = vmatprep.subr.mxu0 0.0
          %1103 = vmatpush1.msra.mxu0 0.0
          %1104 = vmatprep.subr.mxu0 0.0
          %1105 = vmatpush1.msra.mxu0 0.0
          %1106 = vmatprep.subr.mxu0 0.0
          %1107 = vmatpush1.msra.mxu0 0.0
          %1108 = vmatprep.subr.mxu0 0.0
          %1109 = vmatpush1.msra.mxu0 0.0
          %1110 = vmatprep.subr.mxu0 0.0
          %1111 = vmatpush1.msra.mxu0 0.0
          %1112 = vmatprep.mubr.f32.mxu0 0.0
          %1113 = vmatmul.mubr.f32.gmra.mrb[0].mxu0 %v1046
          %v1114 = vpop.f32.mrb[0].mxu0
          %v1115 = vadd.f32 0.0, %v1114
          %v1116 = vpop.f32.mrb[0].mxu0
          %1117 = vdwg.mxu0
          %v1119 = vsel %vm971, %v965, 0
          %1121 = vmatprep.subr.mxu0 0.0
          %1122 = vmatpush1.msra.mxu0 %v961
          %1123 = vmatprep.subr.mxu0 0.0
          %1124 = vmatpush1.msra.mxu0 %v962
          %1125 = vmatprep.subr.mxu0 0.0
          %1126 = vmatpush1.msra.mxu0 0.0
          %1127 = vmatprep.subr.mxu0 0.0
          %1128 = vmatpush1.msra.mxu0 0.0
          %1129 = vmatprep.subr.mxu0 0.0
          %1130 = vmatpush1.msra.mxu0 0.0
          %1131 = vmatprep.subr.mxu0 0.0
          %1132 = vmatpush1.msra.mxu0 0.0
          %1133 = vmatprep.subr.mxu0 0.0
          %1134 = vmatpush1.msra.mxu0 0.0
          %1135 = vmatprep.subr.mxu0 0.0
          %1136 = vmatpush1.msra.mxu0 0.0
          %1137 = vmatprep.subr.mxu0 0.0
          %1138 = vmatpush1.msra.mxu0 0.0
          %1139 = vmatprep.subr.mxu0 0.0
          %1140 = vmatpush1.msra.mxu0 0.0
          %1141 = vmatprep.subr.mxu0 0.0
          %1142 = vmatpush1.msra.mxu0 0.0
          %1143 = vmatprep.subr.mxu0 0.0
          %1144 = vmatpush1.msra.mxu0 0.0
          %1145 = vmatprep.subr.mxu0 0.0
          %1146 = vmatpush1.msra.mxu0 0.0
          %1147 = vmatprep.subr.mxu0 0.0
          %1148 = vmatpush1.msra.mxu0 0.0
          %1149 = vmatprep.subr.mxu0 0.0
          %1150 = vmatpush1.msra.mxu0 0.0
          %1151 = vmatprep.subr.mxu0 0.0
          %1152 = vmatpush1.msra.mxu0 0.0
          %1153 = vmatprep.subr.mxu0 0.0
          %1154 = vmatpush1.msra.mxu0 0.0
          %1155 = vmatprep.subr.mxu0 0.0
          %1156 = vmatpush1.msra.mxu0 0.0
          %1157 = vmatprep.subr.mxu0 0.0
          %1158 = vmatpush1.msra.mxu0 0.0
          %1159 = vmatprep.subr.mxu0 0.0
          %1160 = vmatpush1.msra.mxu0 0.0
          %1161 = vmatprep.subr.mxu0 0.0
          %1162 = vmatpush1.msra.mxu0 0.0
          %1163 = vmatprep.subr.mxu0 0.0
          %1164 = vmatpush1.msra.mxu0 0.0
          %1165 = vmatprep.subr.mxu0 0.0
          %1166 = vmatpush1.msra.mxu0 0.0
          %1167 = vmatprep.subr.mxu0 0.0
          %1168 = vmatpush1.msra.mxu0 0.0
          %1169 = vmatprep.subr.mxu0 0.0
          %1170 = vmatpush1.msra.mxu0 0.0
          %1171 = vmatprep.subr.mxu0 0.0
          %1172 = vmatpush1.msra.mxu0 0.0
          %1173 = vmatprep.subr.mxu0 0.0
          %1174 = vmatpush1.msra.mxu0 0.0
          %1175 = vmatprep.subr.mxu0 0.0
          %1176 = vmatpush1.msra.mxu0 0.0
          %1177 = vmatprep.subr.mxu0 0.0
          %1178 = vmatpush1.msra.mxu0 0.0
          %1179 = vmatprep.subr.mxu0 0.0
          %1180 = vmatpush1.msra.mxu0 0.0
          %1181 = vmatprep.subr.mxu0 0.0
          %1182 = vmatpush1.msra.mxu0 0.0
          %1183 = vmatprep.subr.mxu0 0.0
          %1184 = vmatpush1.msra.mxu0 0.0
          %1185 = vmatprep.mubr.f32.mxu0 0.0
          %1186 = vmatmul.mubr.f32.gmra.mrb[0].mxu0 %v1119
          %v1187 = vpop.f32.mrb[0].mxu0
          %v1188 = vadd.f32 0.0, %v1187
          %v1189 = vpop.f32.mrb[0].mxu0
          %1190 = vdwg.mxu0
          %v1192 = vsel %vm971, %v966, 0
          %1194 = vmatprep.subr.mxu0 0.0
          %1195 = vmatpush1.msra.mxu0 %v961
          %1196 = vmatprep.subr.mxu0 0.0
          %1197 = vmatpush1.msra.mxu0 %v962
          %1198 = vmatprep.subr.mxu0 0.0
          %1199 = vmatpush1.msra.mxu0 0.0
          %1200 = vmatprep.subr.mxu0 0.0
          %1201 = vmatpush1.msra.mxu0 0.0
          %1202 = vmatprep.subr.mxu0 0.0
          %1203 = vmatpush1.msra.mxu0 0.0
          %1204 = vmatprep.subr.mxu0 0.0
          %1205 = vmatpush1.msra.mxu0 0.0
          %1206 = vmatprep.subr.mxu0 0.0
          %1207 = vmatpush1.msra.mxu0 0.0
          %1208 = vmatprep.subr.mxu0 0.0
          %1209 = vmatpush1.msra.mxu0 0.0
          %1210 = vmatprep.subr.mxu0 0.0
          %1211 = vmatpush1.msra.mxu0 0.0
          %1212 = vmatprep.subr.mxu0 0.0
          %1213 = vmatpush1.msra.mxu0 0.0
          %1214 = vmatprep.subr.mxu0 0.0
          %1215 = vmatpush1.msra.mxu0 0.0
          %1216 = vmatprep.subr.mxu0 0.0
          %1217 = vmatpush1.msra.mxu0 0.0
          %1218 = vmatprep.subr.mxu0 0.0
          %1219 = vmatpush1.msra.mxu0 0.0
          %1220 = vmatprep.subr.mxu0 0.0
          %1221 = vmatpush1.msra.mxu0 0.0
          %1222 = vmatprep.subr.mxu0 0.0
          %1223 = vmatpush1.msra.mxu0 0.0
          %1224 = vmatprep.subr.mxu0 0.0
          %1225 = vmatpush1.msra.mxu0 0.0
          %1226 = vmatprep.subr.mxu0 0.0
          %1227 = vmatpush1.msra.mxu0 0.0
          %1228 = vmatprep.subr.mxu0 0.0
          %1229 = vmatpush1.msra.mxu0 0.0
          %1230 = vmatprep.subr.mxu0 0.0
          %1231 = vmatpush1.msra.mxu0 0.0
          %1232 = vmatprep.subr.mxu0 0.0
          %1233 = vmatpush1.msra.mxu0 0.0
          %1234 = vmatprep.subr.mxu0 0.0
          %1235 = vmatpush1.msra.mxu0 0.0
          %1236 = vmatprep.subr.mxu0 0.0
          %1237 = vmatpush1.msra.mxu0 0.0
          %1238 = vmatprep.subr.mxu0 0.0
          %1239 = vmatpush1.msra.mxu0 0.0
          %1240 = vmatprep.subr.mxu0 0.0
          %1241 = vmatpush1.msra.mxu0 0.0
          %1242 = vmatprep.subr.mxu0 0.0
          %1243 = vmatpush1.msra.mxu0 0.0
          %1244 = vmatprep.subr.mxu0 0.0
          %1245 = vmatpush1.msra.mxu0 0.0
          %1246 = vmatprep.subr.mxu0 0.0
          %1247 = vmatpush1.msra.mxu0 0.0
          %1248 = vmatprep.subr.mxu0 0.0
          %1249 = vmatpush1.msra.mxu0 0.0
          %1250 = vmatprep.subr.mxu0 0.0
          %1251 = vmatpush1.msra.mxu0 0.0
          %1252 = vmatprep.subr.mxu0 0.0
          %1253 = vmatpush1.msra.mxu0 0.0
          %1254 = vmatprep.subr.mxu0 0.0
          %1255 = vmatpush1.msra.mxu0 0.0
          %1256 = vmatprep.subr.mxu0 0.0
          %1257 = vmatpush1.msra.mxu0 0.0
          %1258 = vmatprep.mubr.f32.mxu0 0.0
          %1259 = vmatmul.mubr.f32.gmra.mrb[0].mxu0 %v1192
          %v1260 = vpop.f32.mrb[0].mxu0
          %v1261 = vadd.f32 0.0, %v1260
          %v1262 = vpop.f32.mrb[0].mxu0
          %1263 = vdwg.mxu0
          %v1265 = vsel %vm971, %v967, 0
          %1267 = vmatprep.subr.mxu0 0.0
          %1268 = vmatpush1.msra.mxu0 %v961
          %1269 = vmatprep.subr.mxu0 0.0
          %1270 = vmatpush1.msra.mxu0 %v962
          %1271 = vmatprep.subr.mxu0 0.0
          %1272 = vmatpush1.msra.mxu0 0.0
          %1273 = vmatprep.subr.mxu0 0.0
          %1274 = vmatpush1.msra.mxu0 0.0
          %1275 = vmatprep.subr.mxu0 0.0
          %1276 = vmatpush1.msra.mxu0 0.0
          %1277 = vmatprep.subr.mxu0 0.0
          %1278 = vmatpush1.msra.mxu0 0.0
          %1279 = vmatprep.subr.mxu0 0.0
          %1280 = vmatpush1.msra.mxu0 0.0
          %1281 = vmatprep.subr.mxu0 0.0
          %1282 = vmatpush1.msra.mxu0 0.0
          %1283 = vmatprep.subr.mxu0 0.0
          %1284 = vmatpush1.msra.mxu0 0.0
          %1285 = vmatprep.subr.mxu0 0.0
          %1286 = vmatpush1.msra.mxu0 0.0
          %1287 = vmatprep.subr.mxu0 0.0
          %1288 = vmatpush1.msra.mxu0 0.0
          %1289 = vmatprep.subr.mxu0 0.0
          %1290 = vmatpush1.msra.mxu0 0.0
          %1291 = vmatprep.subr.mxu0 0.0
          %1292 = vmatpush1.msra.mxu0 0.0
          %1293 = vmatprep.subr.mxu0 0.0
          %1294 = vmatpush1.msra.mxu0 0.0
          %1295 = vmatprep.subr.mxu0 0.0
          %1296 = vmatpush1.msra.mxu0 0.0
          %1297 = vmatprep.subr.mxu0 0.0
          %1298 = vmatpush1.msra.mxu0 0.0
          %1299 = vmatprep.subr.mxu0 0.0
          %1300 = vmatpush1.msra.mxu0 0.0
          %1301 = vmatprep.subr.mxu0 0.0
          %1302 = vmatpush1.msra.mxu0 0.0
          %1303 = vmatprep.subr.mxu0 0.0
          %1304 = vmatpush1.msra.mxu0 0.0
          %1305 = vmatprep.subr.mxu0 0.0
          %1306 = vmatpush1.msra.mxu0 0.0
          %1307 = vmatprep.subr.mxu0 0.0
          %1308 = vmatpush1.msra.mxu0 0.0
          %1309 = vmatprep.subr.mxu0 0.0
          %1310 = vmatpush1.msra.mxu0 0.0
          %1311 = vmatprep.subr.mxu0 0.0
          %1312 = vmatpush1.msra.mxu0 0.0
          %1313 = vmatprep.subr.mxu0 0.0
          %1314 = vmatpush1.msra.mxu0 0.0
          %1315 = vmatprep.subr.mxu0 0.0
          %1316 = vmatpush1.msra.mxu0 0.0
          %1317 = vmatprep.subr.mxu0 0.0
          %1318 = vmatpush1.msra.mxu0 0.0
          %1319 = vmatprep.subr.mxu0 0.0
          %1320 = vmatpush1.msra.mxu0 0.0
          %1321 = vmatprep.subr.mxu0 0.0
          %1322 = vmatpush1.msra.mxu0 0.0
          %1323 = vmatprep.subr.mxu0 0.0
          %1324 = vmatpush1.msra.mxu0 0.0
          %1325 = vmatprep.subr.mxu0 0.0
          %1326 = vmatpush1.msra.mxu0 0.0
          %1327 = vmatprep.subr.mxu0 0.0
          %1328 = vmatpush1.msra.mxu0 0.0
          %1329 = vmatprep.subr.mxu0 0.0
          %1330 = vmatpush1.msra.mxu0 0.0
          %1331 = vmatprep.mubr.f32.mxu0 0.0
          %1332 = vmatmul.mubr.f32.gmra.mrb[0].mxu0 %v1265
          %v1333 = vpop.f32.mrb[0].mxu0
          %v1334 = vadd.f32 0.0, %v1333
          %v1335 = vpop.f32.mrb[0].mxu0
          %1336 = vdwg.mxu0
          %v1338 = vsel %vm971, %v968, 0
          %1340 = vmatprep.subr.mxu0 0.0
          %1341 = vmatpush1.msra.mxu0 %v961
          %1342 = vmatprep.subr.mxu0 0.0
          %1343 = vmatpush1.msra.mxu0 %v962
          %1344 = vmatprep.subr.mxu0 0.0
          %1345 = vmatpush1.msra.mxu0 0.0
          %1346 = vmatprep.subr.mxu0 0.0
          %1347 = vmatpush1.msra.mxu0 0.0
          %1348 = vmatprep.subr.mxu0 0.0
          %1349 = vmatpush1.msra.mxu0 0.0
          %1350 = vmatprep.subr.mxu0 0.0
          %1351 = vmatpush1.msra.mxu0 0.0
          %1352 = vmatprep.subr.mxu0 0.0
          %1353 = vmatpush1.msra.mxu0 0.0
          %1354 = vmatprep.subr.mxu0 0.0
          %1355 = vmatpush1.msra.mxu0 0.0
          %1356 = vmatprep.subr.mxu0 0.0
          %1357 = vmatpush1.msra.mxu0 0.0
          %1358 = vmatprep.subr.mxu0 0.0
          %1359 = vmatpush1.msra.mxu0 0.0
          %1360 = vmatprep.subr.mxu0 0.0
          %1361 = vmatpush1.msra.mxu0 0.0
          %1362 = vmatprep.subr.mxu0 0.0
          %1363 = vmatpush1.msra.mxu0 0.0
          %1364 = vmatprep.subr.mxu0 0.0
          %1365 = vmatpush1.msra.mxu0 0.0
          %1366 = vmatprep.subr.mxu0 0.0
          %1367 = vmatpush1.msra.mxu0 0.0
          %1368 = vmatprep.subr.mxu0 0.0
          %1369 = vmatpush1.msra.mxu0 0.0
          %1370 = vmatprep.subr.mxu0 0.0
          %1371 = vmatpush1.msra.mxu0 0.0
          %1372 = vmatprep.subr.mxu0 0.0
          %1373 = vmatpush1.msra.mxu0 0.0
          %1374 = vmatprep.subr.mxu0 0.0
          %1375 = vmatpush1.msra.mxu0 0.0
          %1376 = vmatprep.subr.mxu0 0.0
          %1377 = vmatpush1.msra.mxu0 0.0
          %1378 = vmatprep.subr.mxu0 0.0
          %1379 = vmatpush1.msra.mxu0 0.0
          %1380 = vmatprep.subr.mxu0 0.0
          %1381 = vmatpush1.msra.mxu0 0.0
          %1382 = vmatprep.subr.mxu0 0.0
          %1383 = vmatpush1.msra.mxu0 0.0
          %1384 = vmatprep.subr.mxu0 0.0
          %1385 = vmatpush1.msra.mxu0 0.0
          %1386 = vmatprep.subr.mxu0 0.0
          %1387 = vmatpush1.msra.mxu0 0.0
          %1388 = vmatprep.subr.mxu0 0.0
          %1389 = vmatpush1.msra.mxu0 0.0
          %1390 = vmatprep.subr.mxu0 0.0
          %1391 = vmatpush1.msra.mxu0 0.0
          %1392 = vmatprep.subr.mxu0 0.0
          %1393 = vmatpush1.msra.mxu0 0.0
          %1394 = vmatprep.subr.mxu0 0.0
          %1395 = vmatpush1.msra.mxu0 0.0
          %1396 = vmatprep.subr.mxu0 0.0
          %1397 = vmatpush1.msra.mxu0 0.0
          %1398 = vmatprep.subr.mxu0 0.0
          %1399 = vmatpush1.msra.mxu0 0.0
          %1400 = vmatprep.subr.mxu0 0.0
          %1401 = vmatpush1.msra.mxu0 0.0
          %1402 = vmatprep.subr.mxu0 0.0
          %1403 = vmatpush1.msra.mxu0 0.0
          %1404 = vmatprep.mubr.f32.mxu0 0.0
          %1405 = vmatmul.mubr.f32.gmra.mrb[0].mxu0 %v1338
          %v1406 = vpop.f32.mrb[0].mxu0
          %v1407 = vadd.f32 0.0, %v1406
          %v1408 = vpop.f32.mrb[0].mxu0
          %1409 = vdwg.mxu0
          %v1411 = vsel %vm971, %v969, 0
          %1413 = vmatprep.subr.mxu0 0.0
          %1414 = vmatpush1.msra.mxu0 %v961
          %1415 = vmatprep.subr.mxu0 0.0
          %1416 = vmatpush1.msra.mxu0 %v962
          %1417 = vmatprep.subr.mxu0 0.0
          %1418 = vmatpush1.msra.mxu0 0.0
          %1419 = vmatprep.subr.mxu0 0.0
          %1420 = vmatpush1.msra.mxu0 0.0
          %1421 = vmatprep.subr.mxu0 0.0
          %1422 = vmatpush1.msra.mxu0 0.0
          %1423 = vmatprep.subr.mxu0 0.0
          %1424 = vmatpush1.msra.mxu0 0.0
          %1425 = vmatprep.subr.mxu0 0.0
          %1426 = vmatpush1.msra.mxu0 0.0
          %1427 = vmatprep.subr.mxu0 0.0
          %1428 = vmatpush1.msra.mxu0 0.0
          %1429 = vmatprep.subr.mxu0 0.0
          %1430 = vmatpush1.msra.mxu0 0.0
          %1431 = vmatprep.subr.mxu0 0.0
          %1432 = vmatpush1.msra.mxu0 0.0
          %1433 = vmatprep.subr.mxu0 0.0
          %1434 = vmatpush1.msra.mxu0 0.0
          %1435 = vmatprep.subr.mxu0 0.0
          %1436 = vmatpush1.msra.mxu0 0.0
          %1437 = vmatprep.subr.mxu0 0.0
          %1438 = vmatpush1.msra.mxu0 0.0
          %1439 = vmatprep.subr.mxu0 0.0
          %1440 = vmatpush1.msra.mxu0 0.0
          %1441 = vmatprep.subr.mxu0 0.0
          %1442 = vmatpush1.msra.mxu0 0.0
          %1443 = vmatprep.subr.mxu0 0.0
          %1444 = vmatpush1.msra.mxu0 0.0
          %1445 = vmatprep.subr.mxu0 0.0
          %1446 = vmatpush1.msra.mxu0 0.0
          %1447 = vmatprep.subr.mxu0 0.0
          %1448 = vmatpush1.msra.mxu0 0.0
          %1449 = vmatprep.subr.mxu0 0.0
          %1450 = vmatpush1.msra.mxu0 0.0
          %1451 = vmatprep.subr.mxu0 0.0
          %1452 = vmatpush1.msra.mxu0 0.0
          %1453 = vmatprep.subr.mxu0 0.0
          %1454 = vmatpush1.msra.mxu0 0.0
          %1455 = vmatprep.subr.mxu0 0.0
          %1456 = vmatpush1.msra.mxu0 0.0
          %1457 = vmatprep.subr.mxu0 0.0
          %1458 = vmatpush1.msra.mxu0 0.0
          %1459 = vmatprep.subr.mxu0 0.0
          %1460 = vmatpush1.msra.mxu0 0.0
          %1461 = vmatprep.subr.mxu0 0.0
          %1462 = vmatpush1.msra.mxu0 0.0
          %1463 = vmatprep.subr.mxu0 0.0
          %1464 = vmatpush1.msra.mxu0 0.0
          %1465 = vmatprep.subr.mxu0 0.0
          %1466 = vmatpush1.msra.mxu0 0.0
          %1467 = vmatprep.subr.mxu0 0.0
          %1468 = vmatpush1.msra.mxu0 0.0
          %1469 = vmatprep.subr.mxu0 0.0
          %1470 = vmatpush1.msra.mxu0 0.0
          %1471 = vmatprep.subr.mxu0 0.0
          %1472 = vmatpush1.msra.mxu0 0.0
          %1473 = vmatprep.subr.mxu0 0.0
          %1474 = vmatpush1.msra.mxu0 0.0
          %1475 = vmatprep.subr.mxu0 0.0
          %1476 = vmatpush1.msra.mxu0 0.0
          %1477 = vmatprep.mubr.f32.mxu0 0.0
          %1478 = vmatmul.mubr.f32.gmra.mrb[0].mxu0 %v1411
          %v1479 = vpop.f32.mrb[0].mxu0
          %v1480 = vadd.f32 0.0, %v1479
          %v1481 = vpop.f32.mrb[0].mxu0
          %1482 = vdwg.mxu0
          %v1484 = vsel %vm971, %v970, 0
          %1486 = vmatprep.subr.mxu0 0.0
          %1487 = vmatpush1.msra.mxu0 %v961
          %1488 = vmatprep.subr.mxu0 0.0
          %1489 = vmatpush1.msra.mxu0 %v962
          %1490 = vmatprep.subr.mxu0 0.0
          %1491 = vmatpush1.msra.mxu0 0.0
          %1492 = vmatprep.subr.mxu0 0.0
          %1493 = vmatpush1.msra.mxu0 0.0
          %1494 = vmatprep.subr.mxu0 0.0
          %1495 = vmatpush1.msra.mxu0 0.0
          %1496 = vmatprep.subr.mxu0 0.0
          %1497 = vmatpush1.msra.mxu0 0.0
          %1498 = vmatprep.subr.mxu0 0.0
          %1499 = vmatpush1.msra.mxu0 0.0
          %1500 = vmatprep.subr.mxu0 0.0
          %1501 = vmatpush1.msra.mxu0 0.0
          %1502 = vmatprep.subr.mxu0 0.0
          %1503 = vmatpush1.msra.mxu0 0.0
          %1504 = vmatprep.subr.mxu0 0.0
          %1505 = vmatpush1.msra.mxu0 0.0
          %1506 = vmatprep.subr.mxu0 0.0
          %1507 = vmatpush1.msra.mxu0 0.0
          %1508 = vmatprep.subr.mxu0 0.0
          %1509 = vmatpush1.msra.mxu0 0.0
          %1510 = vmatprep.subr.mxu0 0.0
          %1511 = vmatpush1.msra.mxu0 0.0
          %1512 = vmatprep.subr.mxu0 0.0
          %1513 = vmatpush1.msra.mxu0 0.0
          %1514 = vmatprep.subr.mxu0 0.0
          %1515 = vmatpush1.msra.mxu0 0.0
          %1516 = vmatprep.subr.mxu0 0.0
          %1517 = vmatpush1.msra.mxu0 0.0
          %1518 = vmatprep.subr.mxu0 0.0
          %1519 = vmatpush1.msra.mxu0 0.0
          %1520 = vmatprep.subr.mxu0 0.0
          %1521 = vmatpush1.msra.mxu0 0.0
          %1522 = vmatprep.subr.mxu0 0.0
          %1523 = vmatpush1.msra.mxu0 0.0
          %1524 = vmatprep.subr.mxu0 0.0
          %1525 = vmatpush1.msra.mxu0 0.0
          %1526 = vmatprep.subr.mxu0 0.0
          %1527 = vmatpush1.msra.mxu0 0.0
          %1528 = vmatprep.subr.mxu0 0.0
          %1529 = vmatpush1.msra.mxu0 0.0
          %1530 = vmatprep.subr.mxu0 0.0
          %1531 = vmatpush1.msra.mxu0 0.0
          %1532 = vmatprep.subr.mxu0 0.0
          %1533 = vmatpush1.msra.mxu0 0.0
          %1534 = vmatprep.subr.mxu0 0.0
          %1535 = vmatpush1.msra.mxu0 0.0
          %1536 = vmatprep.subr.mxu0 0.0
          %1537 = vmatpush1.msra.mxu0 0.0
          %1538 = vmatprep.subr.mxu0 0.0
          %1539 = vmatpush1.msra.mxu0 0.0
          %1540 = vmatprep.subr.mxu0 0.0
          %1541 = vmatpush1.msra.mxu0 0.0
          %1542 = vmatprep.subr.mxu0 0.0
          %1543 = vmatpush1.msra.mxu0 0.0
          %1544 = vmatprep.subr.mxu0 0.0
          %1545 = vmatpush1.msra.mxu0 0.0
          %1546 = vmatprep.subr.mxu0 0.0
          %1547 = vmatpush1.msra.mxu0 0.0
          %1548 = vmatprep.subr.mxu0 0.0
          %1549 = vmatpush1.msra.mxu0 0.0
          %1550 = vmatprep.mubr.f32.mxu0 0.0
          %1551 = vmatmul.mubr.f32.gmra.mrb[0].mxu0 %v1484
          %v1552 = vpop.f32.mrb[0].mxu0
          %v1553 = vadd.f32 0.0, %v1552
          %v1554 = vpop.f32.mrb[0].mxu0
          %1555 = vdwg.mxu0
          %vm1556 = vcmask 27648
          %1557 = vst.msk [vmem:[%s331] sm:$0xf] %vm1556, %v1042
          %1558 = vst.msk [vmem:[%s331 + $0x4] sm:$0xf] %vm1556, %v1115
          %1559 = vst.msk [vmem:[%s331 + $0x8] sm:$0xf] %vm1556, %v1188
          %1560 = vst.msk [vmem:[%s331 + $0xc] sm:$0xf] %vm1556, %v1261
          %1561 = vst.msk [vmem:[%s331 + $0x10] sm:$0xf] %vm1556, %v1334
          %1562 = vst.msk [vmem:[%s331 + $0x14] sm:$0xf] %vm1556, %v1407
          %1563 = vst.msk [vmem:[%s331 + $0x18] sm:$0xf] %vm1556, %v1480
          %1564 = vst.msk [vmem:[%s331 + $0x1c] sm:$0xf] %vm1556, %v1553
        $region48: #{tpu_custom_call.1} parent=31 // pred_fallthru
          _
        %p1565 = scmp.lt.s32.totalorder %s38, 5
        %s1566 = scalar_select %p1565, %s38, 5
        %s1567 = smul.addr %s1566, 8
        %s1568 = smul.addr %s1567, 4
        %s1569 = scalar_lea.vmem %s6, %s1568
        // Predicated region
        $region49: #{tpu_custom_call.1} parent=31 // pred_check
          %p1570 = pneg %p168
        $region50: #{tpu_custom_call.1} parent=31 // pred_check_branch
          %1572 = sbr.rel (%p1570) target = $region52
        $region51: #{tpu_custom_call.1} parent=31 // pred_region
          _
        $region52: #{tpu_custom_call.1} parent=31 // pred_fallthru
          _
      $region32: #{tpu_custom_call.1} parent=5 // pred_fallthru
        _
      %p1573 = scmp.le.s32.totalorder 2, %s29
      // Predicated region
      $region53: #{tpu_custom_call.1} parent=5 // pred_check
        %p1574 = pneg %p1573
      $region54: #{tpu_custom_call.1} parent=5 // pred_check_branch
        %1576 = sbr.rel (%p1574) target = $region56
      $region55: #{tpu_custom_call.1} parent=5 // pred_region
        %s1577 = ssub.s32 %s29, 2
        // Predicated region
        $region57: #{tpu_custom_call.1} parent=55 // pred_check
          %p1578 = pneg %p174
        $region58: #{tpu_custom_call.1} parent=55 // pred_check_branch
          %1580 = sbr.rel (%p1578) target = $region60
        $region59: #{tpu_custom_call.1} parent=55 // pred_region
          %p1581 = scmp.lt.s32.totalorder %s40, 5
          %s1582 = scalar_select %p1581, %s40, 5
          %s1583 = smul.addr %s1582, 8
          %s1584 = smul.addr %s1583, 4
          %s1585 = scalar_lea.vmem %s6, %s1584
        $region60: #{tpu_custom_call.1} parent=55 // pred_fallthru
          _
      $region56: #{tpu_custom_call.1} parent=5 // pred_fallthru
        _
    $region6: #{tpu_custom_call.1} parent=1 // loop_footer
      %s33 = sadd.s32 1, %s29
    $region7: #{tpu_custom_call.1} parent=1 // loop_footer_branch
      %28 = sbr.rel target = $region3
    $region8: #{tpu_custom_call.1} parent=1 // loop_exit
      _
    %1586 = vsyncpa [#allocation8], 1
    %s1587 = scalar_lea.sflag [#allocation8], 1
    %1588 = vsyncpa %s1587, 1

</llo_original>
